<compile_context>
chip_gen: v7x
topology: tpu7x:2x2x1
jax: 0.10.0
libtpu: 0.0.40
codegen_flags: <defaults>
</compile_context>

<pallas_src>
import functools

import jax
import jax.numpy as jnp
import numpy as np
from jax import lax
from jax.experimental import pallas as pl
from jax.experimental.pallas import tpu as pltpu


# PyTorch nn.LSTM gate order is (i, f, g, o); we pack as (i, f, o, g) so all
# sigmoid gates are contiguous (first 6H lanes) and tanh gates last (2H lanes).
_GATE_ORDER = (0, 1, 3, 2)


def _pack_bidir_weight(wf, wb, H):
    """Pack per-direction (Kf,4H)/(Kb,4H) weights into a block-structured
    (Kf+Kb, 8H) matrix with column layout [i_f,i_b | f_f,f_b | o_f,o_b | g_f,g_b]."""
    zf = jnp.zeros((wf.shape[0], H), wf.dtype)
    zb = jnp.zeros((wb.shape[0], H), wb.dtype)
    cols = []
    for k in _GATE_ORDER:
        cols.append(jnp.concatenate([wf[:, k * H:(k + 1) * H], zb], axis=0))
        cols.append(jnp.concatenate([zf, wb[:, k * H:(k + 1) * H]], axis=0))
    return jnp.concatenate(cols, axis=1)


def _pack_bidir_bias(bf, bb, H):
    cols = []
    for k in _GATE_ORDER:
        cols.append(bf[:, k * H:(k + 1) * H])
        cols.append(bb[:, k * H:(k + 1) * H])
    return jnp.concatenate(cols, axis=1)


# ----------------------------------------------------------------------------
# Single fused kernel: input projection -> bidirectional recurrence -> heads.
# ----------------------------------------------------------------------------
def _lstm_model_kernel(x_ref,                                  # (T*Bp, 2E)  [x_t | x_{T-1-t}]
                       wih_ref, whh_ref, b_ref,                # (2E,8H), (2H,8H), (1,8H)
                       whead_ref, bhead_ref,                   # (2H,NI), (1,NI)
                       wslot_f_ref, wslot_b_ref, bslot_ref,    # (H,NS), (H,NS), (1,NS)
                       head_ref, slot_ref,                     # outputs (Bp,NI), (T*Bp,NS)
                       gx, outf, outb,                         # VMEM scratch
                       *, T, Bp, H):
    H2, H6 = 2 * H, 6 * H

    # ---- Phase 1: one hoisted input projection for BOTH directions ----------
    # Row block t of gx holds forward gates(x_t) and backward gates(x_{T-1-t})
    # in the packed (i,i,f,f,o,o,g,g) column layout — exactly what step t needs.
    gx[...] = (jnp.dot(x_ref[...], wih_ref[...], preferred_element_type=jnp.float32)
               + b_ref[...])

    whh = whh_ref[...]                                         # (2H, 8H), resident

    # ---- Phase 2: recurrence; h/c carried as values (vregs), one MXU op/step -
    def step(t, carry):
        h, c = carry                                           # (Bp, 2H) each
        r = pl.multiple_of(t * Bp, 8)
        gates = gx[pl.ds(r, Bp), :] + jnp.dot(
            h, whh, preferred_element_type=jnp.float32)        # (Bp, 8H)

        sg = jax.nn.sigmoid(gates[:, :H6])                     # one wide EUP push (6H)
        gg = jnp.tanh(gates[:, H6:])                           # one EUP push (2H)
        i_all = sg[:, :H2]
        f_all = sg[:, H2:2 * H2]
        o_all = sg[:, 2 * H2:]
        c_new = f_all * c + i_all * gg                         # (Bp, 2H)
        h_new = o_all * jnp.tanh(c_new)                        # (Bp, 2H)

        # Persist hidden sequence for the slot head (off the dependence chain).
        rb = pl.multiple_of((T - 1 - t) * Bp, 8)
        outf[pl.ds(r, Bp), :] = h_new[:, :H]                   # fwd hidden @ time t
        outb[pl.ds(rb, Bp), :] = h_new[:, H:]                  # bwd hidden @ time T-1-t
        return h_new, c_new

    h0 = jnp.zeros((Bp, H2), jnp.float32)
    c0 = jnp.zeros((Bp, H2), jnp.float32)
    h_last, _ = lax.fori_loop(0, T, step, (h0, c0), unroll=min(T, 8))

    # ---- Phase 3: classifier heads ------------------------------------------
    # h_last = [h_fwd(T-1) | h_bwd(0)] already in the loop carry; ic+it fused.
    head_ref[...] = (jnp.dot(h_last, whead_ref[...],
                             preferred_element_type=jnp.float32) + bhead_ref[...])
    slot_ref[...] = (
        jnp.dot(outf[...], wslot_f_ref[...], preferred_element_type=jnp.float32)
        + jnp.dot(outb[...], wslot_b_ref[...], preferred_element_type=jnp.float32)
        + bslot_ref[...])


# ----------------------------------------------------------------------------
# Full model forward (mirrors the PyTorch LSTM module).
# ----------------------------------------------------------------------------
def lstm_model_forward(tokens, params):
    B, T = tokens.shape
    E = params["embedding"].shape[1]
    H = params["whh_f"].shape[0]
    max_intents = params["w_ic"].shape[1]
    num_slot = params["w_slot"].shape[1]
    Bp = ((B + 7) // 8) * 8                     # pad batch to the 8-sublane tile

    # Embedding lookup (gather) — plain JAX glue; time-major, batch padded.
    emb = jnp.take(params["embedding"], tokens, axis=0)              # (B, T, E)
    x_tm = jnp.transpose(emb, (1, 0, 2))                             # (T, B, E)
    x_tm = jnp.pad(x_tm, ((0, 0), (0, Bp - B), (0, 0)))              # (T, Bp, E)
    # Pair forward-time and reverse-time inputs along features so the single
    # packed input projection produces, per row block t, the gates both
    # directions consume at step t.
    x_cat = jnp.concatenate([x_tm, x_tm[::-1]], axis=-1)             # (T, Bp, 2E)
    x_flat = x_cat.reshape(T * Bp, 2 * E)

    # Packed / re-ordered weights (done once in the wrapper).
    wih = _pack_bidir_weight(params["wih_f"], params["wih_b"], H)    # (2E, 8H)
    whh = _pack_bidir_weight(params["whh_f"], params["whh_b"], H)    # (2H, 8H)
    b = _pack_bidir_bias(params["b_f"], params["b_b"], H)            # (1, 8H)

    # Fuse the two h_last heads (intent-count + intent) into one matmul.
    w_head = jnp.concatenate([params["w_ic"], params["w_it"]], axis=1)   # (2H, NI)
    b_head = jnp.concatenate([params["b_ic"], params["b_it"]])[None, :]  # (1, NI)
    ni_tot = w_head.shape[1]
    w_slot = params["w_slot"]                                            # (2H, NS)
    b_slot = params["b_slot"][None, :]                                   # (1, NS)

    kernel = functools.partial(_lstm_model_kernel, T=T, Bp=Bp, H=H)
    head, slot_flat = pl.pallas_call(
        kernel,
        out_shape=(jax.ShapeDtypeStruct((Bp, ni_tot), jnp.float32),
                   jax.ShapeDtypeStruct((T * Bp, num_slot), jnp.float32)),
        scratch_shapes=[
            pltpu.VMEM((T * Bp, 8 * H), jnp.float32),   # gx: hoisted input projection
            pltpu.VMEM((T * Bp, H), jnp.float32),       # outf: fwd hidden sequence
            pltpu.VMEM((T * Bp, H), jnp.float32),       # outb: bwd hidden sequence
        ],
        # TODO(synk): set pltpu.CompilerParams(vmem_limit_bytes=...) and chunk
        #             gx over T for production T/B (v7x has 64 MiB VMEM).
    )(x_flat, wih, whh, b, w_head, b_head, w_slot[:H], w_slot[H:], b_slot)

    ic_logits = head[:B, :max_intents]
    it_logits = head[:B, max_intents:]
    slot_logits = jnp.transpose(slot_flat.reshape(T, Bp, num_slot)[:, :B], (1, 0, 2))
    return ic_logits, it_logits, slot_logits


# ----------------------------------------------------------------------------
# Pure-JAX reference (for correctness check). Standard PyTorch gate order.
# ----------------------------------------------------------------------------
def _ref_forward(tokens, params):
    H = params["whh_f"].shape[0]
    emb = jnp.take(params["embedding"], tokens, axis=0)      # (B, T, E)
    xs = jnp.transpose(emb, (1, 0, 2))                       # (T, B, E)
    B = xs.shape[1]

    def cell(wih, whh, b):
        def step(carry, x):
            h, c = carry
            gates = x @ wih + h @ whh + b
            i = jax.nn.sigmoid(gates[:, :H])
            f = jax.nn.sigmoid(gates[:, H:2 * H])
            g = jnp.tanh(gates[:, 2 * H:3 * H])
            o = jax.nn.sigmoid(gates[:, 3 * H:])
            c = f * c + i * g
            h = o * jnp.tanh(c)
            return (h, c), h
        return step

    init = (jnp.zeros((B, H), jnp.float32), jnp.zeros((B, H), jnp.float32))
    _, hs_f = jax.lax.scan(cell(params["wih_f"], params["whh_f"],
                                params["b_f"][0]), init, xs)
    _, hs_b = jax.lax.scan(cell(params["wih_b"], params["whh_b"],
                                params["b_b"][0]), init, xs[::-1])
    hs_b = hs_b[::-1]

    lstm_out = jnp.concatenate([hs_f, hs_b], axis=-1)            # (T, B, 2H)
    lstm_out_btc = jnp.transpose(lstm_out, (1, 0, 2))
    h_last = jnp.concatenate([hs_f[-1], hs_b[0]], axis=-1)
    ic = h_last @ params["w_ic"] + params["b_ic"]
    it = h_last @ params["w_it"] + params["b_it"]
    slot = lstm_out_btc @ params["w_slot"] + params["b_slot"]
    return ic, it, slot


# ----------------------------------------------------------------------------
def make_params(key, vocab_size, E, H, num_intent, num_slot, max_intents):
    ks = jax.random.split(key, 16)
    s = 0.1
    p = {
        "embedding": jax.random.normal(ks[0], (vocab_size, E), jnp.float32) * s,
        # LSTM weights stored pre-transposed: (in, 4H) / (H, 4H), gate order i,f,g,o.
        "wih_f": jax.random.normal(ks[1], (E, 4 * H), jnp.float32) * s,
        "whh_f": jax.random.normal(ks[2], (H, 4 * H), jnp.float32) * s,
        "b_f":   (jax.random.normal(ks[3], (1, 4 * H), jnp.float32) * s
                  + jax.random.normal(ks[4], (1, 4 * H), jnp.float32) * s),
        "wih_b": jax.random.normal(ks[5], (E, 4 * H), jnp.float32) * s,
        "whh_b": jax.random.normal(ks[6], (H, 4 * H), jnp.float32) * s,
        "b_b":   (jax.random.normal(ks[7], (1, 4 * H), jnp.float32) * s
                  + jax.random.normal(ks[8], (1, 4 * H), jnp.float32) * s),
        "w_ic":  jax.random.normal(ks[9],  (2 * H, max_intents), jnp.float32) * s,
        "b_ic":  jax.random.normal(ks[10], (max_intents,), jnp.float32) * s,
        "w_it":  jax.random.normal(ks[11], (2 * H, num_intent), jnp.float32) * s,
        "b_it":  jax.random.normal(ks[12], (num_intent,), jnp.float32) * s,
        "w_slot": jax.random.normal(ks[13], (2 * H, num_slot), jnp.float32) * s,
        "b_slot": jax.random.normal(ks[14], (num_slot,), jnp.float32) * s,
    }
    return p


if __name__ == "__main__":
    vocab_size, E, H = 50, 32, 32
    num_intent_labels, num_slot_labels, max_intents = 8, 16, 4
    B, T = 2, 8

    key = jax.random.PRNGKey(0)
    pkey, tkey = jax.random.split(key)
    params = make_params(pkey, vocab_size, E, H,
                         num_intent_labels, num_slot_labels, max_intents)
    tokens = jax.random.randint(tkey, (B, T), 0, vocab_size, dtype=jnp.int32)

    ic, it, slot = lstm_model_forward(tokens, params)
    jax.block_until_ready((ic, it, slot))

    ic_r, it_r, slot_r = _ref_forward(tokens, params)
    # Tolerance accommodates MXU f32 matmul pass-strategy differences between
    # the Pallas kernel and the XLA reference; structural bugs are far larger.
    np.testing.assert_allclose(np.asarray(ic), np.asarray(ic_r), rtol=2e-3, atol=2e-3)
    np.testing.assert_allclose(np.asarray(it), np.asarray(it_r), rtol=2e-3, atol=2e-3)
    np.testing.assert_allclose(np.asarray(slot), np.asarray(slot_r), rtol=2e-3, atol=2e-3)

    assert ic.shape == (B, max_intents)
    assert it.shape == (B, num_intent_labels)
    assert slot.shape == (B, T, num_slot_labels)
    print("KERNEL_OK")
</pallas_src>

<mosaic_0001>
module attributes {stable_mosaic.version = 11 : i64} {
  func.func @_lstm_model_kernel(%arg0: memref<64x64xf32, #tpu.memory_space<vmem>>, %arg1: memref<64x256xf32, #tpu.memory_space<vmem>>, %arg2: memref<64x256xf32, #tpu.memory_space<vmem>>, %arg3: memref<1x256xf32, #tpu.memory_space<vmem>>, %arg4: memref<64x12xf32, #tpu.memory_space<vmem>>, %arg5: memref<1x12xf32, #tpu.memory_space<vmem>>, %arg6: memref<32x16xf32, #tpu.memory_space<vmem>>, %arg7: memref<32x16xf32, #tpu.memory_space<vmem>>, %arg8: memref<1x16xf32, #tpu.memory_space<vmem>>, %arg9: memref<8x12xf32, #tpu.memory_space<vmem>>, %arg10: memref<64x16xf32, #tpu.memory_space<vmem>>, %arg11: memref<64x256xf32, #tpu.memory_space<vmem>>, %arg12: memref<64x32xf32, #tpu.memory_space<vmem>>, %arg13: memref<64x32xf32, #tpu.memory_space<vmem>>) attributes {dimension_semantics = [], scalar_prefetch = 0 : i64, scratch_operands = 3 : i64, tpu.core_type = #tpu.core_type<tc>} {
    %c0 = arith.constant 0 : index
    %c0_0 = arith.constant 0 : index
    %0 = vector.load %arg0[%c0, %c0_0] : memref<64x64xf32, #tpu.memory_space<vmem>>, vector<64x64xf32>
    %c0_1 = arith.constant 0 : index
    %c0_2 = arith.constant 0 : index
    %1 = vector.load %arg1[%c0_1, %c0_2] : memref<64x256xf32, #tpu.memory_space<vmem>>, vector<64x256xf32>
    %cst = arith.constant dense<0.000000e+00> : vector<64x256xf32>
    %2 = tpu.matmul %0, %1, %cst {dimension_numbers = #tpu.dot_dimension_numbers<[1], [0], [0], [1], [0, 0, 1, 1], [], []>} : vector<64x64xf32>, vector<64x256xf32>, vector<64x256xf32> -> vector<64x256xf32>
    %c0_3 = arith.constant 0 : index
    %c0_4 = arith.constant 0 : index
    %3 = vector.load %arg3[%c0_3, %c0_4] : memref<1x256xf32, #tpu.memory_space<vmem>>, vector<1x256xf32>
    %4 = vector.broadcast %3 : vector<1x256xf32> to vector<64x256xf32>
    %5 = arith.addf %2, %4 : vector<64x256xf32>
    %c0_5 = arith.constant 0 : index
    %c0_6 = arith.constant 0 : index
    %6 = vector.load %arg11[%c0_5, %c0_6] : memref<64x256xf32, #tpu.memory_space<vmem>>, vector<64x256xf32>
    tpu.vector_store %arg11[%c0_5, %c0_6], %5 {strides = array<i32>} : memref<64x256xf32, #tpu.memory_space<vmem>>, vector<64x256xf32>,
    %c0_7 = arith.constant 0 : index
    %c0_8 = arith.constant 0 : index
    %7 = vector.load %arg2[%c0_7, %c0_8] : memref<64x256xf32, #tpu.memory_space<vmem>>, vector<64x256xf32>
    %cst_9 = arith.constant 0.000000e+00 : f32
    %8 = vector.broadcast %cst_9 : f32 to vector<8x64xf32>
    %cst_10 = arith.constant 0.000000e+00 : f32
    %9 = vector.broadcast %cst_10 : f32 to vector<8x64xf32>
    %c0_i32 = arith.constant 0 : i32
    %c8_i32 = arith.constant 8 : i32
    %10 = arith.muli %c0_i32, %c8_i32 : i32
    %11 = tpu.assume_multiple %10, 8 : i32
    %12 = arith.index_cast %11 : i32 to index
    %c0_11 = arith.constant 0 : index
    %13 = vector.load %arg11[%12, %c0_11] : memref<64x256xf32, #tpu.memory_space<vmem>>, vector<8x256xf32>
    %cst_12 = arith.constant dense<0.000000e+00> : vector<8x256xf32>
    %14 = tpu.matmul %8, %7, %cst_12 {dimension_numbers = #tpu.dot_dimension_numbers<[1], [0], [0], [1], [0, 0, 1, 1], [], []>} : vector<8x64xf32>, vector<64x256xf32>, vector<8x256xf32> -> vector<8x256xf32>
    %15 = arith.addf %13, %14 : vector<8x256xf32>
    %16 = vector.extract_strided_slice %15 {offsets = [0, 0], sizes = [8, 192], strides = [1, 1]} : vector<8x256xf32> to vector<8x192xf32>
    %17 = arith.negf %16 : vector<8x192xf32>
    %18 = math.exp %17 : vector<8x192xf32>
    %cst_13 = arith.constant 1.000000e+00 : f32
    %19 = vector.broadcast %cst_13 : f32 to vector<8x192xf32>
    %20 = arith.addf %19, %18 : vector<8x192xf32>
    %21 = arith.divf %19, %20 : vector<8x192xf32>
    %22 = vector.extract_strided_slice %15 {offsets = [0, 192], sizes = [8, 64], strides = [1, 1]} : vector<8x256xf32> to vector<8x64xf32>
    %23 = math.tanh %22 : vector<8x64xf32>
    %24 = vector.extract_strided_slice %21 {offsets = [0, 0], sizes = [8, 64], strides = [1, 1]} : vector<8x192xf32> to vector<8x64xf32>
    %25 = vector.extract_strided_slice %21 {offsets = [0, 64], sizes = [8, 64], strides = [1, 1]} : vector<8x192xf32> to vector<8x64xf32>
    %26 = vector.extract_strided_slice %21 {offsets = [0, 128], sizes = [8, 64], strides = [1, 1]} : vector<8x192xf32> to vector<8x64xf32>
    %27 = arith.mulf %25, %9 : vector<8x64xf32>
    %28 = arith.mulf %24, %23 : vector<8x64xf32>
    %29 = arith.addf %27, %28 : vector<8x64xf32>
    %30 = math.tanh %29 : vector<8x64xf32>
    %31 = arith.mulf %26, %30 : vector<8x64xf32>
    %c7_i32 = arith.constant 7 : i32
    %32 = arith.subi %c7_i32, %c0_i32 : i32
    %c8_i32_14 = arith.constant 8 : i32
    %33 = arith.muli %32, %c8_i32_14 : i32
    %34 = tpu.assume_multiple %33, 8 : i32
    %35 = vector.extract_strided_slice %31 {offsets = [0, 0], sizes = [8, 32], strides = [1, 1]} : vector<8x64xf32> to vector<8x32xf32>
    %36 = arith.index_cast %11 : i32 to index
    %c0_15 = arith.constant 0 : index
    %37 = vector.load %arg12[%36, %c0_15] : memref<64x32xf32, #tpu.memory_space<vmem>>, vector<8x32xf32>
    tpu.vector_store %arg12[%36, %c0_15], %35 {strides = array<i32>} : memref<64x32xf32, #tpu.memory_space<vmem>>, vector<8x32xf32>,
    %38 = vector.extract_strided_slice %31 {offsets = [0, 32], sizes = [8, 32], strides = [1, 1]} : vector<8x64xf32> to vector<8x32xf32>
    %39 = arith.index_cast %34 : i32 to index
    %c0_16 = arith.constant 0 : index
    %40 = vector.load %arg13[%39, %c0_16] : memref<64x32xf32, #tpu.memory_space<vmem>>, vector<8x32xf32>
    tpu.vector_store %arg13[%39, %c0_16], %38 {strides = array<i32>} : memref<64x32xf32, #tpu.memory_space<vmem>>, vector<8x32xf32>,
    %c1_i32 = arith.constant 1 : i32
    %c8_i32_17 = arith.constant 8 : i32
    %41 = arith.muli %c1_i32, %c8_i32_17 : i32
    %42 = tpu.assume_multiple %41, 8 : i32
    %43 = arith.index_cast %42 : i32 to index
    %c0_18 = arith.constant 0 : index
    %44 = vector.load %arg11[%43, %c0_18] : memref<64x256xf32, #tpu.memory_space<vmem>>, vector<8x256xf32>
    %cst_19 = arith.constant dense<0.000000e+00> : vector<8x256xf32>
    %45 = tpu.matmul %31, %7, %cst_19 {dimension_numbers = #tpu.dot_dimension_numbers<[1], [0], [0], [1], [0, 0, 1, 1], [], []>} : vector<8x64xf32>, vector<64x256xf32>, vector<8x256xf32> -> vector<8x256xf32>
    %46 = arith.addf %44, %45 : vector<8x256xf32>
    %47 = vector.extract_strided_slice %46 {offsets = [0, 0], sizes = [8, 192], strides = [1, 1]} : vector<8x256xf32> to vector<8x192xf32>
    %48 = arith.negf %47 : vector<8x192xf32>
    %49 = math.exp %48 : vector<8x192xf32>
    %cst_20 = arith.constant 1.000000e+00 : f32
    %50 = vector.broadcast %cst_20 : f32 to vector<8x192xf32>
    %51 = arith.addf %50, %49 : vector<8x192xf32>
    %52 = arith.divf %50, %51 : vector<8x192xf32>
    %53 = vector.extract_strided_slice %46 {offsets = [0, 192], sizes = [8, 64], strides = [1, 1]} : vector<8x256xf32> to vector<8x64xf32>
    %54 = math.tanh %53 : vector<8x64xf32>
    %55 = vector.extract_strided_slice %52 {offsets = [0, 0], sizes = [8, 64], strides = [1, 1]} : vector<8x192xf32> to vector<8x64xf32>
    %56 = vector.extract_strided_slice %52 {offsets = [0, 64], sizes = [8, 64], strides = [1, 1]} : vector<8x192xf32> to vector<8x64xf32>
    %57 = vector.extract_strided_slice %52 {offsets = [0, 128], sizes = [8, 64], strides = [1, 1]} : vector<8x192xf32> to vector<8x64xf32>
    %58 = arith.mulf %56, %29 : vector<8x64xf32>
    %59 = arith.mulf %55, %54 : vector<8x64xf32>
    %60 = arith.addf %58, %59 : vector<8x64xf32>
    %61 = math.tanh %60 : vector<8x64xf32>
    %62 = arith.mulf %57, %61 : vector<8x64xf32>
    %c7_i32_21 = arith.constant 7 : i32
    %63 = arith.subi %c7_i32_21, %c1_i32 : i32
    %c8_i32_22 = arith.constant 8 : i32
    %64 = arith.muli %63, %c8_i32_22 : i32
    %65 = tpu.assume_multiple %64, 8 : i32
    %66 = vector.extract_strided_slice %62 {offsets = [0, 0], sizes = [8, 32], strides = [1, 1]} : vector<8x64xf32> to vector<8x32xf32>
    %67 = arith.index_cast %42 : i32 to index
    %c0_23 = arith.constant 0 : index
    %68 = vector.load %arg12[%67, %c0_23] : memref<64x32xf32, #tpu.memory_space<vmem>>, vector<8x32xf32>
    tpu.vector_store %arg12[%67, %c0_23], %66 {strides = array<i32>} : memref<64x32xf32, #tpu.memory_space<vmem>>, vector<8x32xf32>,
    %69 = vector.extract_strided_slice %62 {offsets = [0, 32], sizes = [8, 32], strides = [1, 1]} : vector<8x64xf32> to vector<8x32xf32>
    %70 = arith.index_cast %65 : i32 to index
    %c0_24 = arith.constant 0 : index
    %71 = vector.load %arg13[%70, %c0_24] : memref<64x32xf32, #tpu.memory_space<vmem>>, vector<8x32xf32>
    tpu.vector_store %arg13[%70, %c0_24], %69 {strides = array<i32>} : memref<64x32xf32, #tpu.memory_space<vmem>>, vector<8x32xf32>,
    %c2_i32 = arith.constant 2 : i32
    %c8_i32_25 = arith.constant 8 : i32
    %72 = arith.muli %c2_i32, %c8_i32_25 : i32
    %73 = tpu.assume_multiple %72, 8 : i32
    %74 = arith.index_cast %73 : i32 to index
    %c0_26 = arith.constant 0 : index
    %75 = vector.load %arg11[%74, %c0_26] : memref<64x256xf32, #tpu.memory_space<vmem>>, vector<8x256xf32>
    %cst_27 = arith.constant dense<0.000000e+00> : vector<8x256xf32>
    %76 = tpu.matmul %62, %7, %cst_27 {dimension_numbers = #tpu.dot_dimension_numbers<[1], [0], [0], [1], [0, 0, 1, 1], [], []>} : vector<8x64xf32>, vector<64x256xf32>, vector<8x256xf32> -> vector<8x256xf32>
    %77 = arith.addf %75, %76 : vector<8x256xf32>
    %78 = vector.extract_strided_slice %77 {offsets = [0, 0], sizes = [8, 192], strides = [1, 1]} : vector<8x256xf32> to vector<8x192xf32>
    %79 = arith.negf %78 : vector<8x192xf32>
    %80 = math.exp %79 : vector<8x192xf32>
    %cst_28 = arith.constant 1.000000e+00 : f32
    %81 = vector.broadcast %cst_28 : f32 to vector<8x192xf32>
    %82 = arith.addf %81, %80 : vector<8x192xf32>
    %83 = arith.divf %81, %82 : vector<8x192xf32>
    %84 = vector.extract_strided_slice %77 {offsets = [0, 192], sizes = [8, 64], strides = [1, 1]} : vector<8x256xf32> to vector<8x64xf32>
    %85 = math.tanh %84 : vector<8x64xf32>
    %86 = vector.extract_strided_slice %83 {offsets = [0, 0], sizes = [8, 64], strides = [1, 1]} : vector<8x192xf32> to vector<8x64xf32>
    %87 = vector.extract_strided_slice %83 {offsets = [0, 64], sizes = [8, 64], strides = [1, 1]} : vector<8x192xf32> to vector<8x64xf32>
    %88 = vector.extract_strided_slice %83 {offsets = [0, 128], sizes = [8, 64], strides = [1, 1]} : vector<8x192xf32> to vector<8x64xf32>
    %89 = arith.mulf %87, %60 : vector<8x64xf32>
    %90 = arith.mulf %86, %85 : vector<8x64xf32>
    %91 = arith.addf %89, %90 : vector<8x64xf32>
    %92 = math.tanh %91 : vector<8x64xf32>
    %93 = arith.mulf %88, %92 : vector<8x64xf32>
    %c7_i32_29 = arith.constant 7 : i32
    %94 = arith.subi %c7_i32_29, %c2_i32 : i32
    %c8_i32_30 = arith.constant 8 : i32
    %95 = arith.muli %94, %c8_i32_30 : i32
    %96 = tpu.assume_multiple %95, 8 : i32
    %97 = vector.extract_strided_slice %93 {offsets = [0, 0], sizes = [8, 32], strides = [1, 1]} : vector<8x64xf32> to vector<8x32xf32>
    %98 = arith.index_cast %73 : i32 to index
    %c0_31 = arith.constant 0 : index
    %99 = vector.load %arg12[%98, %c0_31] : memref<64x32xf32, #tpu.memory_space<vmem>>, vector<8x32xf32>
    tpu.vector_store %arg12[%98, %c0_31], %97 {strides = array<i32>} : memref<64x32xf32, #tpu.memory_space<vmem>>, vector<8x32xf32>,
    %100 = vector.extract_strided_slice %93 {offsets = [0, 32], sizes = [8, 32], strides = [1, 1]} : vector<8x64xf32> to vector<8x32xf32>
    %101 = arith.index_cast %96 : i32 to index
    %c0_32 = arith.constant 0 : index
    %102 = vector.load %arg13[%101, %c0_32] : memref<64x32xf32, #tpu.memory_space<vmem>>, vector<8x32xf32>
    tpu.vector_store %arg13[%101, %c0_32], %100 {strides = array<i32>} : memref<64x32xf32, #tpu.memory_space<vmem>>, vector<8x32xf32>,
    %c3_i32 = arith.constant 3 : i32
    %c8_i32_33 = arith.constant 8 : i32
    %103 = arith.muli %c3_i32, %c8_i32_33 : i32
    %104 = tpu.assume_multiple %103, 8 : i32
    %105 = arith.index_cast %104 : i32 to index
    %c0_34 = arith.constant 0 : index
    %106 = vector.load %arg11[%105, %c0_34] : memref<64x256xf32, #tpu.memory_space<vmem>>, vector<8x256xf32>
    %cst_35 = arith.constant dense<0.000000e+00> : vector<8x256xf32>
    %107 = tpu.matmul %93, %7, %cst_35 {dimension_numbers = #tpu.dot_dimension_numbers<[1], [0], [0], [1], [0, 0, 1, 1], [], []>} : vector<8x64xf32>, vector<64x256xf32>, vector<8x256xf32> -> vector<8x256xf32>
    %108 = arith.addf %106, %107 : vector<8x256xf32>
    %109 = vector.extract_strided_slice %108 {offsets = [0, 0], sizes = [8, 192], strides = [1, 1]} : vector<8x256xf32> to vector<8x192xf32>
    %110 = arith.negf %109 : vector<8x192xf32>
    %111 = math.exp %110 : vector<8x192xf32>
    %cst_36 = arith.constant 1.000000e+00 : f32
    %112 = vector.broadcast %cst_36 : f32 to vector<8x192xf32>
    %113 = arith.addf %112, %111 : vector<8x192xf32>
    %114 = arith.divf %112, %113 : vector<8x192xf32>
    %115 = vector.extract_strided_slice %108 {offsets = [0, 192], sizes = [8, 64], strides = [1, 1]} : vector<8x256xf32> to vector<8x64xf32>
    %116 = math.tanh %115 : vector<8x64xf32>
    %117 = vector.extract_strided_slice %114 {offsets = [0, 0], sizes = [8, 64], strides = [1, 1]} : vector<8x192xf32> to vector<8x64xf32>
    %118 = vector.extract_strided_slice %114 {offsets = [0, 64], sizes = [8, 64], strides = [1, 1]} : vector<8x192xf32> to vector<8x64xf32>
    %119 = vector.extract_strided_slice %114 {offsets = [0, 128], sizes = [8, 64], strides = [1, 1]} : vector<8x192xf32> to vector<8x64xf32>
    %120 = arith.mulf %118, %91 : vector<8x64xf32>
    %121 = arith.mulf %117, %116 : vector<8x64xf32>
    %122 = arith.addf %120, %121 : vector<8x64xf32>
    %123 = math.tanh %122 : vector<8x64xf32>
    %124 = arith.mulf %119, %123 : vector<8x64xf32>
    %c7_i32_37 = arith.constant 7 : i32
    %125 = arith.subi %c7_i32_37, %c3_i32 : i32
    %c8_i32_38 = arith.constant 8 : i32
    %126 = arith.muli %125, %c8_i32_38 : i32
    %127 = tpu.assume_multiple %126, 8 : i32
    %128 = vector.extract_strided_slice %124 {offsets = [0, 0], sizes = [8, 32], strides = [1, 1]} : vector<8x64xf32> to vector<8x32xf32>
    %129 = arith.index_cast %104 : i32 to index
    %c0_39 = arith.constant 0 : index
    %130 = vector.load %arg12[%129, %c0_39] : memref<64x32xf32, #tpu.memory_space<vmem>>, vector<8x32xf32>
    tpu.vector_store %arg12[%129, %c0_39], %128 {strides = array<i32>} : memref<64x32xf32, #tpu.memory_space<vmem>>, vector<8x32xf32>,
    %131 = vector.extract_strided_slice %124 {offsets = [0, 32], sizes = [8, 32], strides = [1, 1]} : vector<8x64xf32> to vector<8x32xf32>
    %132 = arith.index_cast %127 : i32 to index
    %c0_40 = arith.constant 0 : index
    %133 = vector.load %arg13[%132, %c0_40] : memref<64x32xf32, #tpu.memory_space<vmem>>, vector<8x32xf32>
    tpu.vector_store %arg13[%132, %c0_40], %131 {strides = array<i32>} : memref<64x32xf32, #tpu.memory_space<vmem>>, vector<8x32xf32>,
    %c4_i32 = arith.constant 4 : i32
    %c8_i32_41 = arith.constant 8 : i32
    %134 = arith.muli %c4_i32, %c8_i32_41 : i32
    %135 = tpu.assume_multiple %134, 8 : i32
    %136 = arith.index_cast %135 : i32 to index
    %c0_42 = arith.constant 0 : index
    %137 = vector.load %arg11[%136, %c0_42] : memref<64x256xf32, #tpu.memory_space<vmem>>, vector<8x256xf32>
    %cst_43 = arith.constant dense<0.000000e+00> : vector<8x256xf32>
    %138 = tpu.matmul %124, %7, %cst_43 {dimension_numbers = #tpu.dot_dimension_numbers<[1], [0], [0], [1], [0, 0, 1, 1], [], []>} : vector<8x64xf32>, vector<64x256xf32>, vector<8x256xf32> -> vector<8x256xf32>
    %139 = arith.addf %137, %138 : vector<8x256xf32>
    %140 = vector.extract_strided_slice %139 {offsets = [0, 0], sizes = [8, 192], strides = [1, 1]} : vector<8x256xf32> to vector<8x192xf32>
    %141 = arith.negf %140 : vector<8x192xf32>
    %142 = math.exp %141 : vector<8x192xf32>
    %cst_44 = arith.constant 1.000000e+00 : f32
    %143 = vector.broadcast %cst_44 : f32 to vector<8x192xf32>
    %144 = arith.addf %143, %142 : vector<8x192xf32>
    %145 = arith.divf %143, %144 : vector<8x192xf32>
    %146 = vector.extract_strided_slice %139 {offsets = [0, 192], sizes = [8, 64], strides = [1, 1]} : vector<8x256xf32> to vector<8x64xf32>
    %147 = math.tanh %146 : vector<8x64xf32>
    %148 = vector.extract_strided_slice %145 {offsets = [0, 0], sizes = [8, 64], strides = [1, 1]} : vector<8x192xf32> to vector<8x64xf32>
    %149 = vector.extract_strided_slice %145 {offsets = [0, 64], sizes = [8, 64], strides = [1, 1]} : vector<8x192xf32> to vector<8x64xf32>
    %150 = vector.extract_strided_slice %145 {offsets = [0, 128], sizes = [8, 64], strides = [1, 1]} : vector<8x192xf32> to vector<8x64xf32>
    %151 = arith.mulf %149, %122 : vector<8x64xf32>
    %152 = arith.mulf %148, %147 : vector<8x64xf32>
    %153 = arith.addf %151, %152 : vector<8x64xf32>
    %154 = math.tanh %153 : vector<8x64xf32>
    %155 = arith.mulf %150, %154 : vector<8x64xf32>
    %c7_i32_45 = arith.constant 7 : i32
    %156 = arith.subi %c7_i32_45, %c4_i32 : i32
    %c8_i32_46 = arith.constant 8 : i32
    %157 = arith.muli %156, %c8_i32_46 : i32
    %158 = tpu.assume_multiple %157, 8 : i32
    %159 = vector.extract_strided_slice %155 {offsets = [0, 0], sizes = [8, 32], strides = [1, 1]} : vector<8x64xf32> to vector<8x32xf32>
    %160 = arith.index_cast %135 : i32 to index
    %c0_47 = arith.constant 0 : index
    %161 = vector.load %arg12[%160, %c0_47] : memref<64x32xf32, #tpu.memory_space<vmem>>, vector<8x32xf32>
    tpu.vector_store %arg12[%160, %c0_47], %159 {strides = array<i32>} : memref<64x32xf32, #tpu.memory_space<vmem>>, vector<8x32xf32>,
    %162 = vector.extract_strided_slice %155 {offsets = [0, 32], sizes = [8, 32], strides = [1, 1]} : vector<8x64xf32> to vector<8x32xf32>
    %163 = arith.index_cast %158 : i32 to index
    %c0_48 = arith.constant 0 : index
    %164 = vector.load %arg13[%163, %c0_48] : memref<64x32xf32, #tpu.memory_space<vmem>>, vector<8x32xf32>
    tpu.vector_store %arg13[%163, %c0_48], %162 {strides = array<i32>} : memref<64x32xf32, #tpu.memory_space<vmem>>, vector<8x32xf32>,
    %c5_i32 = arith.constant 5 : i32
    %c8_i32_49 = arith.constant 8 : i32
    %165 = arith.muli %c5_i32, %c8_i32_49 : i32
    %166 = tpu.assume_multiple %165, 8 : i32
    %167 = arith.index_cast %166 : i32 to index
    %c0_50 = arith.constant 0 : index
    %168 = vector.load %arg11[%167, %c0_50] : memref<64x256xf32, #tpu.memory_space<vmem>>, vector<8x256xf32>
    %cst_51 = arith.constant dense<0.000000e+00> : vector<8x256xf32>
    %169 = tpu.matmul %155, %7, %cst_51 {dimension_numbers = #tpu.dot_dimension_numbers<[1], [0], [0], [1], [0, 0, 1, 1], [], []>} : vector<8x64xf32>, vector<64x256xf32>, vector<8x256xf32> -> vector<8x256xf32>
    %170 = arith.addf %168, %169 : vector<8x256xf32>
    %171 = vector.extract_strided_slice %170 {offsets = [0, 0], sizes = [8, 192], strides = [1, 1]} : vector<8x256xf32> to vector<8x192xf32>
    %172 = arith.negf %171 : vector<8x192xf32>
    %173 = math.exp %172 : vector<8x192xf32>
    %cst_52 = arith.constant 1.000000e+00 : f32
    %174 = vector.broadcast %cst_52 : f32 to vector<8x192xf32>
    %175 = arith.addf %174, %173 : vector<8x192xf32>
    %176 = arith.divf %174, %175 : vector<8x192xf32>
    %177 = vector.extract_strided_slice %170 {offsets = [0, 192], sizes = [8, 64], strides = [1, 1]} : vector<8x256xf32> to vector<8x64xf32>
    %178 = math.tanh %177 : vector<8x64xf32>
    %179 = vector.extract_strided_slice %176 {offsets = [0, 0], sizes = [8, 64], strides = [1, 1]} : vector<8x192xf32> to vector<8x64xf32>
    %180 = vector.extract_strided_slice %176 {offsets = [0, 64], sizes = [8, 64], strides = [1, 1]} : vector<8x192xf32> to vector<8x64xf32>
    %181 = vector.extract_strided_slice %176 {offsets = [0, 128], sizes = [8, 64], strides = [1, 1]} : vector<8x192xf32> to vector<8x64xf32>
    %182 = arith.mulf %180, %153 : vector<8x64xf32>
    %183 = arith.mulf %179, %178 : vector<8x64xf32>
    %184 = arith.addf %182, %183 : vector<8x64xf32>
    %185 = math.tanh %184 : vector<8x64xf32>
    %186 = arith.mulf %181, %185 : vector<8x64xf32>
    %c7_i32_53 = arith.constant 7 : i32
    %187 = arith.subi %c7_i32_53, %c5_i32 : i32
    %c8_i32_54 = arith.constant 8 : i32
    %188 = arith.muli %187, %c8_i32_54 : i32
    %189 = tpu.assume_multiple %188, 8 : i32
    %190 = vector.extract_strided_slice %186 {offsets = [0, 0], sizes = [8, 32], strides = [1, 1]} : vector<8x64xf32> to vector<8x32xf32>
    %191 = arith.index_cast %166 : i32 to index
    %c0_55 = arith.constant 0 : index
    %192 = vector.load %arg12[%191, %c0_55] : memref<64x32xf32, #tpu.memory_space<vmem>>, vector<8x32xf32>
    tpu.vector_store %arg12[%191, %c0_55], %190 {strides = array<i32>} : memref<64x32xf32, #tpu.memory_space<vmem>>, vector<8x32xf32>,
    %193 = vector.extract_strided_slice %186 {offsets = [0, 32], sizes = [8, 32], strides = [1, 1]} : vector<8x64xf32> to vector<8x32xf32>
    %194 = arith.index_cast %189 : i32 to index
    %c0_56 = arith.constant 0 : index
    %195 = vector.load %arg13[%194, %c0_56] : memref<64x32xf32, #tpu.memory_space<vmem>>, vector<8x32xf32>
    tpu.vector_store %arg13[%194, %c0_56], %193 {strides = array<i32>} : memref<64x32xf32, #tpu.memory_space<vmem>>, vector<8x32xf32>,
    %c6_i32 = arith.constant 6 : i32
    %c8_i32_57 = arith.constant 8 : i32
    %196 = arith.muli %c6_i32, %c8_i32_57 : i32
    %197 = tpu.assume_multiple %196, 8 : i32
    %198 = arith.index_cast %197 : i32 to index
    %c0_58 = arith.constant 0 : index
    %199 = vector.load %arg11[%198, %c0_58] : memref<64x256xf32, #tpu.memory_space<vmem>>, vector<8x256xf32>
    %cst_59 = arith.constant dense<0.000000e+00> : vector<8x256xf32>
    %200 = tpu.matmul %186, %7, %cst_59 {dimension_numbers = #tpu.dot_dimension_numbers<[1], [0], [0], [1], [0, 0, 1, 1], [], []>} : vector<8x64xf32>, vector<64x256xf32>, vector<8x256xf32> -> vector<8x256xf32>
    %201 = arith.addf %199, %200 : vector<8x256xf32>
    %202 = vector.extract_strided_slice %201 {offsets = [0, 0], sizes = [8, 192], strides = [1, 1]} : vector<8x256xf32> to vector<8x192xf32>
    %203 = arith.negf %202 : vector<8x192xf32>
    %204 = math.exp %203 : vector<8x192xf32>
    %cst_60 = arith.constant 1.000000e+00 : f32
    %205 = vector.broadcast %cst_60 : f32 to vector<8x192xf32>
    %206 = arith.addf %205, %204 : vector<8x192xf32>
    %207 = arith.divf %205, %206 : vector<8x192xf32>
    %208 = vector.extract_strided_slice %201 {offsets = [0, 192], sizes = [8, 64], strides = [1, 1]} : vector<8x256xf32> to vector<8x64xf32>
    %209 = math.tanh %208 : vector<8x64xf32>
    %210 = vector.extract_strided_slice %207 {offsets = [0, 0], sizes = [8, 64], strides = [1, 1]} : vector<8x192xf32> to vector<8x64xf32>
    %211 = vector.extract_strided_slice %207 {offsets = [0, 64], sizes = [8, 64], strides = [1, 1]} : vector<8x192xf32> to vector<8x64xf32>
    %212 = vector.extract_strided_slice %207 {offsets = [0, 128], sizes = [8, 64], strides = [1, 1]} : vector<8x192xf32> to vector<8x64xf32>
    %213 = arith.mulf %211, %184 : vector<8x64xf32>
    %214 = arith.mulf %210, %209 : vector<8x64xf32>
    %215 = arith.addf %213, %214 : vector<8x64xf32>
    %216 = math.tanh %215 : vector<8x64xf32>
    %217 = arith.mulf %212, %216 : vector<8x64xf32>
    %c7_i32_61 = arith.constant 7 : i32
    %218 = arith.subi %c7_i32_61, %c6_i32 : i32
    %c8_i32_62 = arith.constant 8 : i32
    %219 = arith.muli %218, %c8_i32_62 : i32
    %220 = tpu.assume_multiple %219, 8 : i32
    %221 = vector.extract_strided_slice %217 {offsets = [0, 0], sizes = [8, 32], strides = [1, 1]} : vector<8x64xf32> to vector<8x32xf32>
    %222 = arith.index_cast %197 : i32 to index
    %c0_63 = arith.constant 0 : index
    %223 = vector.load %arg12[%222, %c0_63] : memref<64x32xf32, #tpu.memory_space<vmem>>, vector<8x32xf32>
    tpu.vector_store %arg12[%222, %c0_63], %221 {strides = array<i32>} : memref<64x32xf32, #tpu.memory_space<vmem>>, vector<8x32xf32>,
    %224 = vector.extract_strided_slice %217 {offsets = [0, 32], sizes = [8, 32], strides = [1, 1]} : vector<8x64xf32> to vector<8x32xf32>
    %225 = arith.index_cast %220 : i32 to index
    %c0_64 = arith.constant 0 : index
    %226 = vector.load %arg13[%225, %c0_64] : memref<64x32xf32, #tpu.memory_space<vmem>>, vector<8x32xf32>
    tpu.vector_store %arg13[%225, %c0_64], %224 {strides = array<i32>} : memref<64x32xf32, #tpu.memory_space<vmem>>, vector<8x32xf32>,
    %c7_i32_65 = arith.constant 7 : i32
    %c8_i32_66 = arith.constant 8 : i32
    %227 = arith.muli %c7_i32_65, %c8_i32_66 : i32
    %228 = tpu.assume_multiple %227, 8 : i32
    %229 = arith.index_cast %228 : i32 to index
    %c0_67 = arith.constant 0 : index
    %230 = vector.load %arg11[%229, %c0_67] : memref<64x256xf32, #tpu.memory_space<vmem>>, vector<8x256xf32>
    %cst_68 = arith.constant dense<0.000000e+00> : vector<8x256xf32>
    %231 = tpu.matmul %217, %7, %cst_68 {dimension_numbers = #tpu.dot_dimension_numbers<[1], [0], [0], [1], [0, 0, 1, 1], [], []>} : vector<8x64xf32>, vector<64x256xf32>, vector<8x256xf32> -> vector<8x256xf32>
    %232 = arith.addf %230, %231 : vector<8x256xf32>
    %233 = vector.extract_strided_slice %232 {offsets = [0, 0], sizes = [8, 192], strides = [1, 1]} : vector<8x256xf32> to vector<8x192xf32>
    %234 = arith.negf %233 : vector<8x192xf32>
    %235 = math.exp %234 : vector<8x192xf32>
    %cst_69 = arith.constant 1.000000e+00 : f32
    %236 = vector.broadcast %cst_69 : f32 to vector<8x192xf32>
    %237 = arith.addf %236, %235 : vector<8x192xf32>
    %238 = arith.divf %236, %237 : vector<8x192xf32>
    %239 = vector.extract_strided_slice %232 {offsets = [0, 192], sizes = [8, 64], strides = [1, 1]} : vector<8x256xf32> to vector<8x64xf32>
    %240 = math.tanh %239 : vector<8x64xf32>
    %241 = vector.extract_strided_slice %238 {offsets = [0, 0], sizes = [8, 64], strides = [1, 1]} : vector<8x192xf32> to vector<8x64xf32>
    %242 = vector.extract_strided_slice %238 {offsets = [0, 64], sizes = [8, 64], strides = [1, 1]} : vector<8x192xf32> to vector<8x64xf32>
    %243 = vector.extract_strided_slice %238 {offsets = [0, 128], sizes = [8, 64], strides = [1, 1]} : vector<8x192xf32> to vector<8x64xf32>
    %244 = arith.mulf %242, %215 : vector<8x64xf32>
    %245 = arith.mulf %241, %240 : vector<8x64xf32>
    %246 = arith.addf %244, %245 : vector<8x64xf32>
    %247 = math.tanh %246 : vector<8x64xf32>
    %248 = arith.mulf %243, %247 : vector<8x64xf32>
    %c7_i32_70 = arith.constant 7 : i32
    %249 = arith.subi %c7_i32_70, %c7_i32_65 : i32
    %c8_i32_71 = arith.constant 8 : i32
    %250 = arith.muli %249, %c8_i32_71 : i32
    %251 = tpu.assume_multiple %250, 8 : i32
    %252 = vector.extract_strided_slice %248 {offsets = [0, 0], sizes = [8, 32], strides = [1, 1]} : vector<8x64xf32> to vector<8x32xf32>
    %253 = arith.index_cast %228 : i32 to index
    %c0_72 = arith.constant 0 : index
    %254 = vector.load %arg12[%253, %c0_72] : memref<64x32xf32, #tpu.memory_space<vmem>>, vector<8x32xf32>
    tpu.vector_store %arg12[%253, %c0_72], %252 {strides = array<i32>} : memref<64x32xf32, #tpu.memory_space<vmem>>, vector<8x32xf32>,
    %255 = vector.extract_strided_slice %248 {offsets = [0, 32], sizes = [8, 32], strides = [1, 1]} : vector<8x64xf32> to vector<8x32xf32>
    %256 = arith.index_cast %251 : i32 to index
    %c0_73 = arith.constant 0 : index
    %257 = vector.load %arg13[%256, %c0_73] : memref<64x32xf32, #tpu.memory_space<vmem>>, vector<8x32xf32>
    tpu.vector_store %arg13[%256, %c0_73], %255 {strides = array<i32>} : memref<64x32xf32, #tpu.memory_space<vmem>>, vector<8x32xf32>,
    %c8_i32_74 = arith.constant 8 : i32
    %c0_75 = arith.constant 0 : index
    %c0_76 = arith.constant 0 : index
    %258 = vector.load %arg4[%c0_75, %c0_76] : memref<64x12xf32, #tpu.memory_space<vmem>>, vector<64x12xf32>
    %cst_77 = arith.constant dense<0.000000e+00> : vector<8x12xf32>
    %259 = tpu.matmul %248, %258, %cst_77 {dimension_numbers = #tpu.dot_dimension_numbers<[1], [0], [0], [1], [0, 0, 1, 1], [], []>} : vector<8x64xf32>, vector<64x12xf32>, vector<8x12xf32> -> vector<8x12xf32>
    %c0_78 = arith.constant 0 : index
    %c0_79 = arith.constant 0 : index
    %260 = vector.load %arg5[%c0_78, %c0_79] : memref<1x12xf32, #tpu.memory_space<vmem>>, vector<1x12xf32>
    %261 = vector.broadcast %260 : vector<1x12xf32> to vector<8x12xf32>
    %262 = arith.addf %259, %261 : vector<8x12xf32>
    %c0_80 = arith.constant 0 : index
    %c0_81 = arith.constant 0 : index
    %263 = vector.load %arg9[%c0_80, %c0_81] : memref<8x12xf32, #tpu.memory_space<vmem>>, vector<8x12xf32>
    tpu.vector_store %arg9[%c0_80, %c0_81], %262 {strides = array<i32>} : memref<8x12xf32, #tpu.memory_space<vmem>>, vector<8x12xf32>,
    %c0_82 = arith.constant 0 : index
    %c0_83 = arith.constant 0 : index
    %264 = vector.load %arg12[%c0_82, %c0_83] : memref<64x32xf32, #tpu.memory_space<vmem>>, vector<64x32xf32>
    %c0_84 = arith.constant 0 : index
    %c0_85 = arith.constant 0 : index
    %265 = vector.load %arg6[%c0_84, %c0_85] : memref<32x16xf32, #tpu.memory_space<vmem>>, vector<32x16xf32>
    %cst_86 = arith.constant dense<0.000000e+00> : vector<64x16xf32>
    %266 = tpu.matmul %264, %265, %cst_86 {dimension_numbers = #tpu.dot_dimension_numbers<[1], [0], [0], [1], [0, 0, 1, 1], [], []>} : vector<64x32xf32>, vector<32x16xf32>, vector<64x16xf32> -> vector<64x16xf32>
    %c0_87 = arith.constant 0 : index
    %c0_88 = arith.constant 0 : index
    %267 = vector.load %arg13[%c0_87, %c0_88] : memref<64x32xf32, #tpu.memory_space<vmem>>, vector<64x32xf32>
    %c0_89 = arith.constant 0 : index
    %c0_90 = arith.constant 0 : index
    %268 = vector.load %arg7[%c0_89, %c0_90] : memref<32x16xf32, #tpu.memory_space<vmem>>, vector<32x16xf32>
    %cst_91 = arith.constant dense<0.000000e+00> : vector<64x16xf32>
    %269 = tpu.matmul %267, %268, %cst_91 {dimension_numbers = #tpu.dot_dimension_numbers<[1], [0], [0], [1], [0, 0, 1, 1], [], []>} : vector<64x32xf32>, vector<32x16xf32>, vector<64x16xf32> -> vector<64x16xf32>
    %270 = arith.addf %266, %269 : vector<64x16xf32>
    %c0_92 = arith.constant 0 : index
    %c0_93 = arith.constant 0 : index
    %271 = vector.load %arg8[%c0_92, %c0_93] : memref<1x16xf32, #tpu.memory_space<vmem>>, vector<1x16xf32>
    %272 = vector.broadcast %271 : vector<1x16xf32> to vector<64x16xf32>
    %273 = arith.addf %270, %272 : vector<64x16xf32>
    %c0_94 = arith.constant 0 : index
    %c0_95 = arith.constant 0 : index
    %274 = vector.load %arg10[%c0_94, %c0_95] : memref<64x16xf32, #tpu.memory_space<vmem>>, vector<64x16xf32>
    tpu.vector_store %arg10[%c0_94, %c0_95], %273 {strides = array<i32>} : memref<64x16xf32, #tpu.memory_space<vmem>>, vector<64x16xf32>,
    return
  }
}

</mosaic_0001>

<llo_original>
// kernel: tpu_custom_call.1
$region0: #{tpu_custom_call.1}
  #allocation0 [shape = 'u32[]', space=smem, size = 0x4, offset = 0x4, fixed_abs, tag = 'smem constant byte address 0x4 - core index']
  #allocation1 [shape = 'u32[144,128]{1,0:T(1,128)}', space=vmem, size = 0x12000, scoped, tag = 'internal scratch']
  #allocation2 [shape = 'f32[64,256]{1,0:T(8,128)}', space=vmem, size = 0x10000, scoped, tag = 'scratch operand']
  #allocation3 [shape = 'f32[64,32]{1,0:T(8,128)}', space=vmem, size = 0x8000, scoped, tag = 'scratch operand']
  #allocation4 [shape = 'f32[64,32]{1,0:T(8,128)}', space=vmem, size = 0x8000, scoped, tag = 'scratch operand']
  %s0 = inlined_call_operand.hbm [shape: f32[64,64], index: 0, kind: input, shape index: {}]
  %s1 = inlined_call_operand.vmem [shape: f32[64,256], index: 1, kind: input, shape index: {}]
  %s2 = inlined_call_operand.hbm [shape: f32[64,256], index: 2, kind: input, shape index: {}]
  %s3 = inlined_call_operand.vmem [shape: f32[1,256], index: 3, kind: input, shape index: {}]
  %s4 = inlined_call_operand.vmem [shape: f32[64,12], index: 4, kind: input, shape index: {}]
  %s5 = inlined_call_operand.vmem [shape: f32[1,12], index: 5, kind: input, shape index: {}]
  %s6 = inlined_call_operand.vmem [shape: f32[32,16], index: 6, kind: input, shape index: {}]
  %s7 = inlined_call_operand.vmem [shape: f32[32,16], index: 7, kind: input, shape index: {}]
  %s8 = inlined_call_operand.vmem [shape: f32[1,16], index: 8, kind: input, shape index: {}]
  %s9 = inlined_call_operand.hbm [shape: f32[8,12], index: 9, kind: output, shape index: {0}]
  %s10 = inlined_call_operand.vmem [shape: f32[64,16], index: 10, kind: output, shape index: {1}]
  %11 = xla_tuple %s9, %s10
  %s12 = sld [smem:[#allocation0]]
  $region62: #{tpu_custom_call.1} parent=0
    _
  %s14 = ssub.s32 1, %s12
  %s15 = scalar_select 0, %s14, %s12
  $region1: #{tpu_custom_call.1} parent=0
    #allocation5 [shape = 'u8[32768]{0}', space=vmem, size = 0x8000, scoped, tag = 'input window, operand 0, single buffered']
    #allocation6 [shape = 's32[1]{0}', space=sflag, size = 0x4, scoped, tag = 'scoped memory for tpu_custom_call.1']
    #allocation7 [shape = 's32[1]{0}', space=sflag, size = 0x4, scoped, tag = 'scoped memory for tpu_custom_call.1']
    #allocation8 [shape = 'u8[65536]{0}', space=vmem, size = 0x10000, scoped, tag = 'input window, operand 2, single buffered']
    #allocation9 [shape = 's32[1]{0}', space=sflag, size = 0x4, scoped, tag = 'scoped memory for tpu_custom_call.1']
    #allocation10 [shape = 'u8[4096]{0}', space=vmem, size = 0x1000, scoped, tag = 'output window, operand 0, single buffered']
    %16 = vsyncpa [#allocation6], 0
    %17 = vsyncpa [#allocation9], 0
    %18 = vsyncpa [#allocation7], 0
    // Predicated region
    $region2: #{tpu_custom_call.1} parent=1 // pred_check
      _
    $region3: #{tpu_custom_call.1} parent=1 // pred_check_branch
      %20 = sbr.rel (0) target = $region5
    $region4: #{tpu_custom_call.1} parent=1 // pred_region
      %s22 = ssub.s32 1024, 1024
      %23 = vsyncadd [#allocation6], %s22
      %s24 = sshll.u32 [#allocation5], 4
      %s25 = int_to_ptr.vmem [resolvable:$true] %s24
      %30 = dma.hbm_to_vmem [thread:$0]  %s0, 1024, %s25, [#allocation6], 128, 128, 8
    $region5: #{tpu_custom_call.1} parent=1 // pred_fallthru
      _
    // Predicated region
    $region6: #{tpu_custom_call.1} parent=1 // pred_check
      _
    $region7: #{tpu_custom_call.1} parent=1 // pred_check_branch
      %32 = sbr.rel (0) target = $region9
    $region8: #{tpu_custom_call.1} parent=1 // pred_region
      _
    $region9: #{tpu_custom_call.1} parent=1 // pred_fallthru
      _
    // Predicated region
    $region10: #{tpu_custom_call.1} parent=1 // pred_check
      _
    $region11: #{tpu_custom_call.1} parent=1 // pred_check_branch
      %34 = sbr.rel (0) target = $region13
    $region12: #{tpu_custom_call.1} parent=1 // pred_region
      %s36 = ssub.s32 2048, 2048
      %37 = vsyncadd [#allocation9], %s36
      %s38 = sshll.u32 [#allocation8], 4
      %s39 = int_to_ptr.vmem [resolvable:$true] %s38
      %44 = dma.hbm_to_vmem [thread:$0]  %s2, 2048, %s39, [#allocation9], 256, 256, 16
    $region13: #{tpu_custom_call.1} parent=1 // pred_fallthru
      _
    // Predicated region
    $region14: #{tpu_custom_call.1} parent=1 // pred_check
      _
    $region15: #{tpu_custom_call.1} parent=1 // pred_check_branch
      %46 = sbr.rel (0) target = $region17
    $region16: #{tpu_custom_call.1} parent=1 // pred_region
      _
    $region17: #{tpu_custom_call.1} parent=1 // pred_fallthru
      _
    // Predicated region
    $region18: #{tpu_custom_call.1} parent=1 // pred_check
      _
    $region19: #{tpu_custom_call.1} parent=1 // pred_check_branch
      %48 = sbr.rel (0) target = $region21
    $region20: #{tpu_custom_call.1} parent=1 // pred_region
      _
    $region21: #{tpu_custom_call.1} parent=1 // pred_fallthru
      _
    // Predicated region
    $region22: #{tpu_custom_call.1} parent=1 // pred_check
      _
    $region23: #{tpu_custom_call.1} parent=1 // pred_check_branch
      %50 = sbr.rel (0) target = $region25
    $region24: #{tpu_custom_call.1} parent=1 // pred_region
      _
    $region25: #{tpu_custom_call.1} parent=1 // pred_fallthru
      _
    // Predicated region
    $region26: #{tpu_custom_call.1} parent=1 // pred_check
      _
    $region27: #{tpu_custom_call.1} parent=1 // pred_check_branch
      %52 = sbr.rel (0) target = $region29
    $region28: #{tpu_custom_call.1} parent=1 // pred_region
      _
    $region29: #{tpu_custom_call.1} parent=1 // pred_fallthru
      _
    // Predicated region
    $region30: #{tpu_custom_call.1} parent=1 // pred_check
      _
    $region31: #{tpu_custom_call.1} parent=1 // pred_check_branch
      %54 = sbr.rel (0) target = $region33
    $region32: #{tpu_custom_call.1} parent=1 // pred_region
      _
    $region33: #{tpu_custom_call.1} parent=1 // pred_fallthru
      _
    // Predicated region
    $region34: #{tpu_custom_call.1} parent=1 // pred_check
      _
    $region35: #{tpu_custom_call.1} parent=1 // pred_check_branch
      %56 = sbr.rel (0) target = $region37
    $region36: #{tpu_custom_call.1} parent=1 // pred_region
      _
    $region37: #{tpu_custom_call.1} parent=1 // pred_fallthru
      _
    // Predicated region
    $region38: #{tpu_custom_call.1} parent=1 // pred_check
      _
    $region39: #{tpu_custom_call.1} parent=1 // pred_check_branch
      %58 = sbr.rel (0) target = $region41
    $region40: #{tpu_custom_call.1} parent=1 // pred_region
      %59 = dma.done [#allocation6], 1024
    $region41: #{tpu_custom_call.1} parent=1 // pred_fallthru
      _
    // Predicated region
    $region42: #{tpu_custom_call.1} parent=1 // pred_check
      _
    $region43: #{tpu_custom_call.1} parent=1 // pred_check_branch
      %61 = sbr.rel (0) target = $region45
    $region44: #{tpu_custom_call.1} parent=1 // pred_region
      %62 = dma.done [#allocation9], 2048
    $region45: #{tpu_custom_call.1} parent=1 // pred_fallthru
      _
    %v63 = vld [vmem:[#allocation5] sm:$0xff]
    %v64 = vld [vmem:[#allocation5 + $0x8] sm:$0xff]
    %v65 = vld [vmem:[#allocation5 + $0x10] sm:$0xff]
    %v66 = vld [vmem:[#allocation5 + $0x18] sm:$0xff]
    %v67 = vld [vmem:[#allocation5 + $0x20] sm:$0xff]
    %v68 = vld [vmem:[#allocation5 + $0x28] sm:$0xff]
    %v69 = vld [vmem:[#allocation5 + $0x30] sm:$0xff]
    %v70 = vld [vmem:[#allocation5 + $0x38] sm:$0xff]
    %v71 = vld [vmem:[%s1] sm:$0xff]
    %v72 = vld [vmem:[%s1 + $0x8] sm:$0xff]
    %v73 = vld [vmem:[%s1 + $0x10] sm:$0xff]
    %v74 = vld [vmem:[%s1 + $0x18] sm:$0xff]
    %v75 = vld [vmem:[%s1 + $0x20] sm:$0xff]
    %v76 = vld [vmem:[%s1 + $0x28] sm:$0xff]
    %v77 = vld [vmem:[%s1 + $0x30] sm:$0xff]
    %v78 = vld [vmem:[%s1 + $0x38] sm:$0xff]
    %v79 = vld [vmem:[%s1 + $0x40] sm:$0xff]
    %v80 = vld [vmem:[%s1 + $0x48] sm:$0xff]
    %v81 = vld [vmem:[%s1 + $0x50] sm:$0xff]
    %v82 = vld [vmem:[%s1 + $0x58] sm:$0xff]
    %v83 = vld [vmem:[%s1 + $0x60] sm:$0xff]
    %v84 = vld [vmem:[%s1 + $0x68] sm:$0xff]
    %v85 = vld [vmem:[%s1 + $0x70] sm:$0xff]
    %v86 = vld [vmem:[%s1 + $0x78] sm:$0xff]
    %v87 = vld [vmem:[%s3] sm:$0x3]
    %v89 = vlaneseq
    %v90 = vshrl.u32 %v89, 7
    %v91 = vsub.s32 0, %v90
    %v92 = vrot.slane %v87, %v91
    %v93 = vlaneseq
    %v94 = vshrl.u32 %v93, 7
    %v95 = vsub.s32 1, %v94
    %v96 = vrot.slane %v87, %v95
    %vm99 = vcmask 523264
    %v101 = vsel %vm99, %v63, 0
    %v104 = vsel %vm99, %v64, 0
    %v107 = vsel %vm99, %v65, 0
    %v110 = vsel %vm99, %v66, 0
    %v113 = vsel %vm99, %v67, 0
    %v116 = vsel %vm99, %v68, 0
    %v119 = vsel %vm99, %v69, 0
    %v122 = vsel %vm99, %v70, 0
    %124 = vmatprep.subr.mxu0 %v72
    %125 = vmatpush1.msra.mxu0 %v71
    %126 = vmatprep.subr.mxu0 %v74
    %127 = vmatpush1.msra.mxu0 %v73
    %128 = vmatprep.subr.mxu0 %v76
    %129 = vmatpush1.msra.mxu0 %v75
    %130 = vmatprep.subr.mxu0 %v78
    %131 = vmatpush1.msra.mxu0 %v77
    %132 = vmatprep.subr.mxu0 %v80
    %133 = vmatpush1.msra.mxu0 %v79
    %134 = vmatprep.subr.mxu0 %v82
    %135 = vmatpush1.msra.mxu0 %v81
    %136 = vmatprep.subr.mxu0 %v84
    %137 = vmatpush1.msra.mxu0 %v83
    %138 = vmatprep.subr.mxu0 %v86
    %139 = vmatpush1.msra.mxu0 %v85
    %140 = vmatprep.subr.mxu0 0.0
    %141 = vmatpush1.msra.mxu0 0.0
    %142 = vmatprep.subr.mxu0 0.0
    %143 = vmatpush1.msra.mxu0 0.0
    %144 = vmatprep.subr.mxu0 0.0
    %145 = vmatpush1.msra.mxu0 0.0
    %146 = vmatprep.subr.mxu0 0.0
    %147 = vmatpush1.msra.mxu0 0.0
    %148 = vmatprep.subr.mxu0 0.0
    %149 = vmatpush1.msra.mxu0 0.0
    %150 = vmatprep.subr.mxu0 0.0
    %151 = vmatpush1.msra.mxu0 0.0
    %152 = vmatprep.subr.mxu0 0.0
    %153 = vmatpush1.msra.mxu0 0.0
    %154 = vmatprep.subr.mxu0 0.0
    %155 = vmatpush1.msra.mxu0 0.0
    %156 = vmatprep.subr.mxu0 0.0
    %157 = vmatpush1.msra.mxu0 0.0
    %158 = vmatprep.subr.mxu0 0.0
    %159 = vmatpush1.msra.mxu0 0.0
    %160 = vmatprep.subr.mxu0 0.0
    %161 = vmatpush1.msra.mxu0 0.0
    %162 = vmatprep.subr.mxu0 0.0
    %163 = vmatpush1.msra.mxu0 0.0
    %164 = vmatprep.subr.mxu0 0.0
    %165 = vmatpush1.msra.mxu0 0.0
    %166 = vmatprep.subr.mxu0 0.0
    %167 = vmatpush1.msra.mxu0 0.0
    %168 = vmatprep.subr.mxu0 0.0
    %169 = vmatpush1.msra.mxu0 0.0
    %170 = vmatprep.subr.mxu0 0.0
    %171 = vmatpush1.msra.mxu0 0.0
    %172 = vmatprep.subr.mxu0 0.0
    %173 = vmatpush1.msra.mxu0 0.0
    %174 = vmatprep.subr.mxu0 0.0
    %175 = vmatpush1.msra.mxu0 0.0
    %176 = vmatprep.subr.mxu0 0.0
    %177 = vmatpush1.msra.mxu0 0.0
    %178 = vmatprep.subr.mxu0 0.0
    %179 = vmatpush1.msra.mxu0 0.0
    %180 = vmatprep.subr.mxu0 0.0
    %181 = vmatpush1.msra.mxu0 0.0
    %182 = vmatprep.subr.mxu0 0.0
    %183 = vmatpush1.msra.mxu0 0.0
    %184 = vmatprep.subr.mxu0 0.0
    %185 = vmatpush1.msra.mxu0 0.0
    %186 = vmatprep.subr.mxu0 0.0
    %187 = vmatpush1.msra.mxu0 0.0
    %188 = vmatprep.mubr.f32.mxu0 0.0
    %189 = vmatmul.mubr.f32.gmra.mrb[0].mxu0 %v101
    %v190 = vpop.f32.mrb[0].mxu0
    %v191 = vadd.f32 %v92, %v190
    %v192 = vpop.f32.mrb[0].mxu0
    %v193 = vadd.f32 %v96, %v192
    %194 = vmatprep.mubr.f32.mxu0 0.0
    %195 = vmatmul.mubr.f32.gmra.mrb[0].mxu0 %v104
    %v196 = vpop.f32.mrb[0].mxu0
    %v197 = vadd.f32 %v92, %v196
    %v198 = vpop.f32.mrb[0].mxu0
    %v199 = vadd.f32 %v96, %v198
    %200 = vmatprep.mubr.f32.mxu0 0.0
    %201 = vmatmul.mubr.f32.gmra.mrb[0].mxu0 %v107
    %v202 = vpop.f32.mrb[0].mxu0
    %v203 = vadd.f32 %v92, %v202
    %v204 = vpop.f32.mrb[0].mxu0
    %v205 = vadd.f32 %v96, %v204
    %206 = vmatprep.mubr.f32.mxu0 0.0
    %207 = vmatmul.mubr.f32.gmra.mrb[0].mxu0 %v110
    %v208 = vpop.f32.mrb[0].mxu0
    %v209 = vadd.f32 %v92, %v208
    %v210 = vpop.f32.mrb[0].mxu0
    %v211 = vadd.f32 %v96, %v210
    %212 = vmatprep.mubr.f32.mxu0 0.0
    %213 = vmatmul.mubr.f32.gmra.mrb[0].mxu0 %v113
    %v214 = vpop.f32.mrb[0].mxu0
    %v215 = vadd.f32 %v92, %v214
    %v216 = vpop.f32.mrb[0].mxu0
    %v217 = vadd.f32 %v96, %v216
    %218 = vmatprep.mubr.f32.mxu0 0.0
    %219 = vmatmul.mubr.f32.gmra.mrb[0].mxu0 %v116
    %v220 = vpop.f32.mrb[0].mxu0
    %v221 = vadd.f32 %v92, %v220
    %v222 = vpop.f32.mrb[0].mxu0
    %v223 = vadd.f32 %v96, %v222
    %224 = vmatprep.mubr.f32.mxu0 0.0
    %225 = vmatmul.mubr.f32.gmra.mrb[0].mxu0 %v119
    %v226 = vpop.f32.mrb[0].mxu0
    %v227 = vadd.f32 %v92, %v226
    %v228 = vpop.f32.mrb[0].mxu0
    %v229 = vadd.f32 %v96, %v228
    %230 = vmatprep.mubr.f32.mxu0 0.0
    %231 = vmatmul.mubr.f32.gmra.mrb[0].mxu0 %v122
    %v232 = vpop.f32.mrb[0].mxu0
    %v233 = vadd.f32 %v92, %v232
    %v234 = vpop.f32.mrb[0].mxu0
    %v235 = vadd.f32 %v96, %v234
    %236 = vdwg.mxu0
    %237 = vst [vmem:[#allocation2] sm:$0xff] %v191
    %238 = vst [vmem:[#allocation2 + $0x8] sm:$0xff] %v193
    %239 = vst [vmem:[#allocation2 + $0x10] sm:$0xff] %v197
    %240 = vst [vmem:[#allocation2 + $0x18] sm:$0xff] %v199
    %241 = vst [vmem:[#allocation2 + $0x20] sm:$0xff] %v203
    %242 = vst [vmem:[#allocation2 + $0x28] sm:$0xff] %v205
    %243 = vst [vmem:[#allocation2 + $0x30] sm:$0xff] %v209
    %244 = vst [vmem:[#allocation2 + $0x38] sm:$0xff] %v211
    %245 = vst [vmem:[#allocation2 + $0x40] sm:$0xff] %v215
    %246 = vst [vmem:[#allocation2 + $0x48] sm:$0xff] %v217
    %247 = vst [vmem:[#allocation2 + $0x50] sm:$0xff] %v221
    %248 = vst [vmem:[#allocation2 + $0x58] sm:$0xff] %v223
    %249 = vst [vmem:[#allocation2 + $0x60] sm:$0xff] %v227
    %250 = vst [vmem:[#allocation2 + $0x68] sm:$0xff] %v229
    %251 = vst [vmem:[#allocation2 + $0x70] sm:$0xff] %v233
    %252 = vst [vmem:[#allocation2 + $0x78] sm:$0xff] %v235
    %v253 = vld [vmem:[#allocation8] sm:$0xff]
    %v254 = vld [vmem:[#allocation8 + $0x8] sm:$0xff]
    %v255 = vld [vmem:[#allocation8 + $0x10] sm:$0xff]
    %v256 = vld [vmem:[#allocation8 + $0x18] sm:$0xff]
    %v257 = vld [vmem:[#allocation8 + $0x20] sm:$0xff]
    %v258 = vld [vmem:[#allocation8 + $0x28] sm:$0xff]
    %v259 = vld [vmem:[#allocation8 + $0x30] sm:$0xff]
    %v260 = vld [vmem:[#allocation8 + $0x38] sm:$0xff]
    %v261 = vld [vmem:[#allocation8 + $0x40] sm:$0xff]
    %v262 = vld [vmem:[#allocation8 + $0x48] sm:$0xff]
    %v263 = vld [vmem:[#allocation8 + $0x50] sm:$0xff]
    %v264 = vld [vmem:[#allocation8 + $0x58] sm:$0xff]
    %v265 = vld [vmem:[#allocation8 + $0x60] sm:$0xff]
    %v266 = vld [vmem:[#allocation8 + $0x68] sm:$0xff]
    %v267 = vld [vmem:[#allocation8 + $0x70] sm:$0xff]
    %v268 = vld [vmem:[#allocation8 + $0x78] sm:$0xff]
    %s269 = smul.u32 0, 2
    %s270 = smul.addr %s269, 8
    %s271 = scalar_lea.vmem [#allocation2], %s270
    %v272 = vld [vmem:[%s271] sm:$0xff]
    %v273 = vld [vmem:[%s271 + $0x8] sm:$0xff]
    %v275 = vsel %vm99, 0.0, 0
    %277 = vmatprep.subr.mxu0 %v254
    %278 = vmatpush1.msra.mxu0 %v253
    %279 = vmatprep.subr.mxu0 %v256
    %280 = vmatpush1.msra.mxu0 %v255
    %281 = vmatprep.subr.mxu0 %v258
    %282 = vmatpush1.msra.mxu0 %v257
    %283 = vmatprep.subr.mxu0 %v260
    %284 = vmatpush1.msra.mxu0 %v259
    %285 = vmatprep.subr.mxu0 %v262
    %286 = vmatpush1.msra.mxu0 %v261
    %287 = vmatprep.subr.mxu0 %v264
    %288 = vmatpush1.msra.mxu0 %v263
    %289 = vmatprep.subr.mxu0 %v266
    %290 = vmatpush1.msra.mxu0 %v265
    %291 = vmatprep.subr.mxu0 %v268
    %292 = vmatpush1.msra.mxu0 %v267
    %293 = vmatprep.subr.mxu0 0.0
    %294 = vmatpush1.msra.mxu0 0.0
    %295 = vmatprep.subr.mxu0 0.0
    %296 = vmatpush1.msra.mxu0 0.0
    %297 = vmatprep.subr.mxu0 0.0
    %298 = vmatpush1.msra.mxu0 0.0
    %299 = vmatprep.subr.mxu0 0.0
    %300 = vmatpush1.msra.mxu0 0.0
    %301 = vmatprep.subr.mxu0 0.0
    %302 = vmatpush1.msra.mxu0 0.0
    %303 = vmatprep.subr.mxu0 0.0
    %304 = vmatpush1.msra.mxu0 0.0
    %305 = vmatprep.subr.mxu0 0.0
    %306 = vmatpush1.msra.mxu0 0.0
    %307 = vmatprep.subr.mxu0 0.0
    %308 = vmatpush1.msra.mxu0 0.0
    %309 = vmatprep.subr.mxu0 0.0
    %310 = vmatpush1.msra.mxu0 0.0
    %311 = vmatprep.subr.mxu0 0.0
    %312 = vmatpush1.msra.mxu0 0.0
    %313 = vmatprep.subr.mxu0 0.0
    %314 = vmatpush1.msra.mxu0 0.0
    %315 = vmatprep.subr.mxu0 0.0
    %316 = vmatpush1.msra.mxu0 0.0
    %317 = vmatprep.subr.mxu0 0.0
    %318 = vmatpush1.msra.mxu0 0.0
    %319 = vmatprep.subr.mxu0 0.0
    %320 = vmatpush1.msra.mxu0 0.0
    %321 = vmatprep.subr.mxu0 0.0
    %322 = vmatpush1.msra.mxu0 0.0
    %323 = vmatprep.subr.mxu0 0.0
    %324 = vmatpush1.msra.mxu0 0.0
    %325 = vmatprep.subr.mxu0 0.0
    %326 = vmatpush1.msra.mxu0 0.0
    %327 = vmatprep.subr.mxu0 0.0
    %328 = vmatpush1.msra.mxu0 0.0
    %329 = vmatprep.subr.mxu0 0.0
    %330 = vmatpush1.msra.mxu0 0.0
    %331 = vmatprep.subr.mxu0 0.0
    %332 = vmatpush1.msra.mxu0 0.0
    %333 = vmatprep.subr.mxu0 0.0
    %334 = vmatpush1.msra.mxu0 0.0
    %335 = vmatprep.subr.mxu0 0.0
    %336 = vmatpush1.msra.mxu0 0.0
    %337 = vmatprep.subr.mxu0 0.0
    %338 = vmatpush1.msra.mxu0 0.0
    %339 = vmatprep.subr.mxu0 0.0
    %340 = vmatpush1.msra.mxu0 0.0
    %341 = vmatprep.mubr.f32.mxu0 0.0
    %342 = vmatmul.mubr.f32.gmra.mrb[0].mxu0 %v275
    %v343 = vpop.f32.mrb[0].mxu0
    %v344 = vadd.f32 0.0, %v343
    %v345 = vpop.f32.mrb[0].mxu0
    %v346 = vadd.f32 0.0, %v345
    %347 = vdwg.mxu0
    %v348 = vadd.f32 %v272, %v344
    %v349 = vadd.f32 %v273, %v346
    %v350 = vxor.u32 %v348, 2147483648
    %v351 = vxor.u32 %v349, 2147483648
    %v352 = vmul.f32 %v350, 1.442695
    %v353 = vpow.pop %v352
    %v354 = vmul.f32 %v351, 1.442695
    %v355 = vpow.pop %v354
    %v356 = vadd.f32 %v353, 1.0
    %v357 = vadd.f32 %v355, 1.0
    %v358 = vrcp.pop %v356
    %v359 = vmul.f32 1.0, %v358
    %v360 = vrcp.pop %v357
    %v361 = vmul.f32 1.0, %v360
    %v362 = vtanh.pop %v349
    %v363 = vmul.f32 %v359, 0.0
    %365 = vrot.lane.b32.xlu0 %v362, 64
    %v366 = vpop.permute.xlu0 %365
    %v368 = vmul.f32 %v359, %v366
    %370 = vrot.lane.b32.xlu0 %v368, 64
    %v371 = vpop.permute.xlu0 %370
    %v373 = vadd.f32 %v363, %v371
    %v374 = vtanh.pop %v373
    %376 = vrot.lane.b32.xlu0 %v374, 64
    %v377 = vpop.permute.xlu0 %376
    %v379 = vmul.f32 %v361, %v377
    %vm380 = vcmask 261120
    %381 = vst.msk [vmem:[#allocation3] sm:$0xff] %vm380, %v379
    %383 = vrot.lane.b32.xlu0 %v379, 96
    %v384 = vpop.permute.xlu0 %383
    %s386 = scalar_lea.vmem [#allocation4], 56
    %387 = vst.msk [vmem:[%s386] sm:$0xff] %vm380, %v384
    %s388 = smul.u32 1, 2
    %s389 = smul.addr %s388, 8
    %s390 = scalar_lea.vmem [#allocation2], %s389
    %v391 = vld [vmem:[%s390] sm:$0xff]
    %v392 = vld [vmem:[%s390 + $0x8] sm:$0xff]
    %v393 = vsel %vm99, %v379, 0
    %395 = vmatprep.subr.mxu0 %v254
    %396 = vmatpush1.msra.mxu0 %v253
    %397 = vmatprep.subr.mxu0 %v256
    %398 = vmatpush1.msra.mxu0 %v255
    %399 = vmatprep.subr.mxu0 %v258
    %400 = vmatpush1.msra.mxu0 %v257
    %401 = vmatprep.subr.mxu0 %v260
    %402 = vmatpush1.msra.mxu0 %v259
    %403 = vmatprep.subr.mxu0 %v262
    %404 = vmatpush1.msra.mxu0 %v261
    %405 = vmatprep.subr.mxu0 %v264
    %406 = vmatpush1.msra.mxu0 %v263
    %407 = vmatprep.subr.mxu0 %v266
    %408 = vmatpush1.msra.mxu0 %v265
    %409 = vmatprep.subr.mxu0 %v268
    %410 = vmatpush1.msra.mxu0 %v267
    %411 = vmatprep.subr.mxu0 0.0
    %412 = vmatpush1.msra.mxu0 0.0
    %413 = vmatprep.subr.mxu0 0.0
    %414 = vmatpush1.msra.mxu0 0.0
    %415 = vmatprep.subr.mxu0 0.0
    %416 = vmatpush1.msra.mxu0 0.0
    %417 = vmatprep.subr.mxu0 0.0
    %418 = vmatpush1.msra.mxu0 0.0
    %419 = vmatprep.subr.mxu0 0.0
    %420 = vmatpush1.msra.mxu0 0.0
    %421 = vmatprep.subr.mxu0 0.0
    %422 = vmatpush1.msra.mxu0 0.0
    %423 = vmatprep.subr.mxu0 0.0
    %424 = vmatpush1.msra.mxu0 0.0
    %425 = vmatprep.subr.mxu0 0.0
    %426 = vmatpush1.msra.mxu0 0.0
    %427 = vmatprep.subr.mxu0 0.0
    %428 = vmatpush1.msra.mxu0 0.0
    %429 = vmatprep.subr.mxu0 0.0
    %430 = vmatpush1.msra.mxu0 0.0
    %431 = vmatprep.subr.mxu0 0.0
    %432 = vmatpush1.msra.mxu0 0.0
    %433 = vmatprep.subr.mxu0 0.0
    %434 = vmatpush1.msra.mxu0 0.0
    %435 = vmatprep.subr.mxu0 0.0
    %436 = vmatpush1.msra.mxu0 0.0
    %437 = vmatprep.subr.mxu0 0.0
    %438 = vmatpush1.msra.mxu0 0.0
    %439 = vmatprep.subr.mxu0 0.0
    %440 = vmatpush1.msra.mxu0 0.0
    %441 = vmatprep.subr.mxu0 0.0
    %442 = vmatpush1.msra.mxu0 0.0
    %443 = vmatprep.subr.mxu0 0.0
    %444 = vmatpush1.msra.mxu0 0.0
    %445 = vmatprep.subr.mxu0 0.0
    %446 = vmatpush1.msra.mxu0 0.0
    %447 = vmatprep.subr.mxu0 0.0
    %448 = vmatpush1.msra.mxu0 0.0
    %449 = vmatprep.subr.mxu0 0.0
    %450 = vmatpush1.msra.mxu0 0.0
    %451 = vmatprep.subr.mxu0 0.0
    %452 = vmatpush1.msra.mxu0 0.0
    %453 = vmatprep.subr.mxu0 0.0
    %454 = vmatpush1.msra.mxu0 0.0
    %455 = vmatprep.subr.mxu0 0.0
    %456 = vmatpush1.msra.mxu0 0.0
    %457 = vmatprep.subr.mxu0 0.0
    %458 = vmatpush1.msra.mxu0 0.0
    %459 = vmatprep.mubr.f32.mxu0 0.0
    %460 = vmatmul.mubr.f32.gmra.mrb[0].mxu0 %v393
    %v461 = vpop.f32.mrb[0].mxu0
    %v462 = vadd.f32 0.0, %v461
    %v463 = vpop.f32.mrb[0].mxu0
    %v464 = vadd.f32 0.0, %v463
    %465 = vdwg.mxu0
    %v466 = vadd.f32 %v391, %v462
    %v467 = vadd.f32 %v392, %v464
    %v468 = vxor.u32 %v466, 2147483648
    %v469 = vxor.u32 %v467, 2147483648
    %v470 = vmul.f32 %v468, 1.442695
    %v471 = vpow.pop %v470
    %v472 = vmul.f32 %v469, 1.442695
    %v473 = vpow.pop %v472
    %v474 = vadd.f32 %v471, 1.0
    %v475 = vadd.f32 %v473, 1.0
    %v476 = vrcp.pop %v474
    %v477 = vmul.f32 1.0, %v476
    %v478 = vrcp.pop %v475
    %v479 = vmul.f32 1.0, %v478
    %v480 = vtanh.pop %v467
    %v481 = vmul.f32 %v477, %v373
    %483 = vrot.lane.b32.xlu0 %v480, 64
    %v484 = vpop.permute.xlu0 %483
    %v486 = vmul.f32 %v477, %v484
    %488 = vrot.lane.b32.xlu0 %v486, 64
    %v489 = vpop.permute.xlu0 %488
    %v491 = vadd.f32 %v481, %v489
    %v492 = vtanh.pop %v491
    %494 = vrot.lane.b32.xlu0 %v492, 64
    %v495 = vpop.permute.xlu0 %494
    %v497 = vmul.f32 %v479, %v495
    %s498 = scalar_lea.vmem [#allocation3], 8
    %499 = vst.msk [vmem:[%s498] sm:$0xff] %vm380, %v497
    %501 = vrot.lane.b32.xlu0 %v497, 96
    %v502 = vpop.permute.xlu0 %501
    %s504 = scalar_lea.vmem [#allocation4], 48
    %505 = vst.msk [vmem:[%s504] sm:$0xff] %vm380, %v502
    %s506 = smul.u32 2, 2
    %s507 = smul.addr %s506, 8
    %s508 = scalar_lea.vmem [#allocation2], %s507
    %v509 = vld [vmem:[%s508] sm:$0xff]
    %v510 = vld [vmem:[%s508 + $0x8] sm:$0xff]
    %v511 = vsel %vm99, %v497, 0
    %513 = vmatprep.subr.mxu0 %v254
    %514 = vmatpush1.msra.mxu0 %v253
    %515 = vmatprep.subr.mxu0 %v256
    %516 = vmatpush1.msra.mxu0 %v255
    %517 = vmatprep.subr.mxu0 %v258
    %518 = vmatpush1.msra.mxu0 %v257
    %519 = vmatprep.subr.mxu0 %v260
    %520 = vmatpush1.msra.mxu0 %v259
    %521 = vmatprep.subr.mxu0 %v262
    %522 = vmatpush1.msra.mxu0 %v261
    %523 = vmatprep.subr.mxu0 %v264
    %524 = vmatpush1.msra.mxu0 %v263
    %525 = vmatprep.subr.mxu0 %v266
    %526 = vmatpush1.msra.mxu0 %v265
    %527 = vmatprep.subr.mxu0 %v268
    %528 = vmatpush1.msra.mxu0 %v267
    %529 = vmatprep.subr.mxu0 0.0
    %530 = vmatpush1.msra.mxu0 0.0
    %531 = vmatprep.subr.mxu0 0.0
    %532 = vmatpush1.msra.mxu0 0.0
    %533 = vmatprep.subr.mxu0 0.0
    %534 = vmatpush1.msra.mxu0 0.0
    %535 = vmatprep.subr.mxu0 0.0
    %536 = vmatpush1.msra.mxu0 0.0
    %537 = vmatprep.subr.mxu0 0.0
    %538 = vmatpush1.msra.mxu0 0.0
    %539 = vmatprep.subr.mxu0 0.0
    %540 = vmatpush1.msra.mxu0 0.0
    %541 = vmatprep.subr.mxu0 0.0
    %542 = vmatpush1.msra.mxu0 0.0
    %543 = vmatprep.subr.mxu0 0.0
    %544 = vmatpush1.msra.mxu0 0.0
    %545 = vmatprep.subr.mxu0 0.0
    %546 = vmatpush1.msra.mxu0 0.0
    %547 = vmatprep.subr.mxu0 0.0
    %548 = vmatpush1.msra.mxu0 0.0
    %549 = vmatprep.subr.mxu0 0.0
    %550 = vmatpush1.msra.mxu0 0.0
    %551 = vmatprep.subr.mxu0 0.0
    %552 = vmatpush1.msra.mxu0 0.0
    %553 = vmatprep.subr.mxu0 0.0
    %554 = vmatpush1.msra.mxu0 0.0
    %555 = vmatprep.subr.mxu0 0.0
    %556 = vmatpush1.msra.mxu0 0.0
    %557 = vmatprep.subr.mxu0 0.0
    %558 = vmatpush1.msra.mxu0 0.0
    %559 = vmatprep.subr.mxu0 0.0
    %560 = vmatpush1.msra.mxu0 0.0
    %561 = vmatprep.subr.mxu0 0.0
    %562 = vmatpush1.msra.mxu0 0.0
    %563 = vmatprep.subr.mxu0 0.0
    %564 = vmatpush1.msra.mxu0 0.0
    %565 = vmatprep.subr.mxu0 0.0
    %566 = vmatpush1.msra.mxu0 0.0
    %567 = vmatprep.subr.mxu0 0.0
    %568 = vmatpush1.msra.mxu0 0.0
    %569 = vmatprep.subr.mxu0 0.0
    %570 = vmatpush1.msra.mxu0 0.0
    %571 = vmatprep.subr.mxu0 0.0
    %572 = vmatpush1.msra.mxu0 0.0
    %573 = vmatprep.subr.mxu0 0.0
    %574 = vmatpush1.msra.mxu0 0.0
    %575 = vmatprep.subr.mxu0 0.0
    %576 = vmatpush1.msra.mxu0 0.0
    %577 = vmatprep.mubr.f32.mxu0 0.0
    %578 = vmatmul.mubr.f32.gmra.mrb[0].mxu0 %v511
    %v579 = vpop.f32.mrb[0].mxu0
    %v580 = vadd.f32 0.0, %v579
    %v581 = vpop.f32.mrb[0].mxu0
    %v582 = vadd.f32 0.0, %v581
    %583 = vdwg.mxu0
    %v584 = vadd.f32 %v509, %v580
    %v585 = vadd.f32 %v510, %v582
    %v586 = vxor.u32 %v584, 2147483648
    %v587 = vxor.u32 %v585, 2147483648
    %v588 = vmul.f32 %v586, 1.442695
    %v589 = vpow.pop %v588
    %v590 = vmul.f32 %v587, 1.442695
    %v591 = vpow.pop %v590
    %v592 = vadd.f32 %v589, 1.0
    %v593 = vadd.f32 %v591, 1.0
    %v594 = vrcp.pop %v592
    %v595 = vmul.f32 1.0, %v594
    %v596 = vrcp.pop %v593
    %v597 = vmul.f32 1.0, %v596
    %v598 = vtanh.pop %v585
    %v599 = vmul.f32 %v595, %v491
    %601 = vrot.lane.b32.xlu0 %v598, 64
    %v602 = vpop.permute.xlu0 %601
    %v604 = vmul.f32 %v595, %v602
    %606 = vrot.lane.b32.xlu0 %v604, 64
    %v607 = vpop.permute.xlu0 %606
    %v609 = vadd.f32 %v599, %v607
    %v610 = vtanh.pop %v609
    %612 = vrot.lane.b32.xlu0 %v610, 64
    %v613 = vpop.permute.xlu0 %612
    %v615 = vmul.f32 %v597, %v613
    %s616 = scalar_lea.vmem [#allocation3], 16
    %617 = vst.msk [vmem:[%s616] sm:$0xff] %vm380, %v615
    %619 = vrot.lane.b32.xlu0 %v615, 96
    %v620 = vpop.permute.xlu0 %619
    %s622 = scalar_lea.vmem [#allocation4], 40
    %623 = vst.msk [vmem:[%s622] sm:$0xff] %vm380, %v620
    %s624 = smul.u32 3, 2
    %s625 = smul.addr %s624, 8
    %s626 = scalar_lea.vmem [#allocation2], %s625
    %v627 = vld [vmem:[%s626] sm:$0xff]
    %v628 = vld [vmem:[%s626 + $0x8] sm:$0xff]
    %v629 = vsel %vm99, %v615, 0
    %631 = vmatprep.subr.mxu0 %v254
    %632 = vmatpush1.msra.mxu0 %v253
    %633 = vmatprep.subr.mxu0 %v256
    %634 = vmatpush1.msra.mxu0 %v255
    %635 = vmatprep.subr.mxu0 %v258
    %636 = vmatpush1.msra.mxu0 %v257
    %637 = vmatprep.subr.mxu0 %v260
    %638 = vmatpush1.msra.mxu0 %v259
    %639 = vmatprep.subr.mxu0 %v262
    %640 = vmatpush1.msra.mxu0 %v261
    %641 = vmatprep.subr.mxu0 %v264
    %642 = vmatpush1.msra.mxu0 %v263
    %643 = vmatprep.subr.mxu0 %v266
    %644 = vmatpush1.msra.mxu0 %v265
    %645 = vmatprep.subr.mxu0 %v268
    %646 = vmatpush1.msra.mxu0 %v267
    %647 = vmatprep.subr.mxu0 0.0
    %648 = vmatpush1.msra.mxu0 0.0
    %649 = vmatprep.subr.mxu0 0.0
    %650 = vmatpush1.msra.mxu0 0.0
    %651 = vmatprep.subr.mxu0 0.0
    %652 = vmatpush1.msra.mxu0 0.0
    %653 = vmatprep.subr.mxu0 0.0
    %654 = vmatpush1.msra.mxu0 0.0
    %655 = vmatprep.subr.mxu0 0.0
    %656 = vmatpush1.msra.mxu0 0.0
    %657 = vmatprep.subr.mxu0 0.0
    %658 = vmatpush1.msra.mxu0 0.0
    %659 = vmatprep.subr.mxu0 0.0
    %660 = vmatpush1.msra.mxu0 0.0
    %661 = vmatprep.subr.mxu0 0.0
    %662 = vmatpush1.msra.mxu0 0.0
    %663 = vmatprep.subr.mxu0 0.0
    %664 = vmatpush1.msra.mxu0 0.0
    %665 = vmatprep.subr.mxu0 0.0
    %666 = vmatpush1.msra.mxu0 0.0
    %667 = vmatprep.subr.mxu0 0.0
    %668 = vmatpush1.msra.mxu0 0.0
    %669 = vmatprep.subr.mxu0 0.0
    %670 = vmatpush1.msra.mxu0 0.0
    %671 = vmatprep.subr.mxu0 0.0
    %672 = vmatpush1.msra.mxu0 0.0
    %673 = vmatprep.subr.mxu0 0.0
    %674 = vmatpush1.msra.mxu0 0.0
    %675 = vmatprep.subr.mxu0 0.0
    %676 = vmatpush1.msra.mxu0 0.0
    %677 = vmatprep.subr.mxu0 0.0
    %678 = vmatpush1.msra.mxu0 0.0
    %679 = vmatprep.subr.mxu0 0.0
    %680 = vmatpush1.msra.mxu0 0.0
    %681 = vmatprep.subr.mxu0 0.0
    %682 = vmatpush1.msra.mxu0 0.0
    %683 = vmatprep.subr.mxu0 0.0
    %684 = vmatpush1.msra.mxu0 0.0
    %685 = vmatprep.subr.mxu0 0.0
    %686 = vmatpush1.msra.mxu0 0.0
    %687 = vmatprep.subr.mxu0 0.0
    %688 = vmatpush1.msra.mxu0 0.0
    %689 = vmatprep.subr.mxu0 0.0
    %690 = vmatpush1.msra.mxu0 0.0
    %691 = vmatprep.subr.mxu0 0.0
    %692 = vmatpush1.msra.mxu0 0.0
    %693 = vmatprep.subr.mxu0 0.0
    %694 = vmatpush1.msra.mxu0 0.0
    %695 = vmatprep.mubr.f32.mxu0 0.0
    %696 = vmatmul.mubr.f32.gmra.mrb[0].mxu0 %v629
    %v697 = vpop.f32.mrb[0].mxu0
    %v698 = vadd.f32 0.0, %v697
    %v699 = vpop.f32.mrb[0].mxu0
    %v700 = vadd.f32 0.0, %v699
    %701 = vdwg.mxu0
    %v702 = vadd.f32 %v627, %v698
    %v703 = vadd.f32 %v628, %v700
    %v704 = vxor.u32 %v702, 2147483648
    %v705 = vxor.u32 %v703, 2147483648
    %v706 = vmul.f32 %v704, 1.442695
    %v707 = vpow.pop %v706
    %v708 = vmul.f32 %v705, 1.442695
    %v709 = vpow.pop %v708
    %v710 = vadd.f32 %v707, 1.0
    %v711 = vadd.f32 %v709, 1.0
    %v712 = vrcp.pop %v710
    %v713 = vmul.f32 1.0, %v712
    %v714 = vrcp.pop %v711
    %v715 = vmul.f32 1.0, %v714
    %v716 = vtanh.pop %v703
    %v717 = vmul.f32 %v713, %v609
    %719 = vrot.lane.b32.xlu0 %v716, 64
    %v720 = vpop.permute.xlu0 %719
    %v722 = vmul.f32 %v713, %v720
    %724 = vrot.lane.b32.xlu0 %v722, 64
    %v725 = vpop.permute.xlu0 %724
    %v727 = vadd.f32 %v717, %v725
    %v728 = vtanh.pop %v727
    %730 = vrot.lane.b32.xlu0 %v728, 64
    %v731 = vpop.permute.xlu0 %730
    %v733 = vmul.f32 %v715, %v731
    %s734 = scalar_lea.vmem [#allocation3], 24
    %735 = vst.msk [vmem:[%s734] sm:$0xff] %vm380, %v733
    %737 = vrot.lane.b32.xlu0 %v733, 96
    %v738 = vpop.permute.xlu0 %737
    %s740 = scalar_lea.vmem [#allocation4], 32
    %741 = vst.msk [vmem:[%s740] sm:$0xff] %vm380, %v738
    %s742 = smul.u32 4, 2
    %s743 = smul.addr %s742, 8
    %s744 = scalar_lea.vmem [#allocation2], %s743
    %v745 = vld [vmem:[%s744] sm:$0xff]
    %v746 = vld [vmem:[%s744 + $0x8] sm:$0xff]
    %v747 = vsel %vm99, %v733, 0
    %749 = vmatprep.subr.mxu0 %v254
    %750 = vmatpush1.msra.mxu0 %v253
    %751 = vmatprep.subr.mxu0 %v256
    %752 = vmatpush1.msra.mxu0 %v255
    %753 = vmatprep.subr.mxu0 %v258
    %754 = vmatpush1.msra.mxu0 %v257
    %755 = vmatprep.subr.mxu0 %v260
    %756 = vmatpush1.msra.mxu0 %v259
    %757 = vmatprep.subr.mxu0 %v262
    %758 = vmatpush1.msra.mxu0 %v261
    %759 = vmatprep.subr.mxu0 %v264
    %760 = vmatpush1.msra.mxu0 %v263
    %761 = vmatprep.subr.mxu0 %v266
    %762 = vmatpush1.msra.mxu0 %v265
    %763 = vmatprep.subr.mxu0 %v268
    %764 = vmatpush1.msra.mxu0 %v267
    %765 = vmatprep.subr.mxu0 0.0
    %766 = vmatpush1.msra.mxu0 0.0
    %767 = vmatprep.subr.mxu0 0.0
    %768 = vmatpush1.msra.mxu0 0.0
    %769 = vmatprep.subr.mxu0 0.0
    %770 = vmatpush1.msra.mxu0 0.0
    %771 = vmatprep.subr.mxu0 0.0
    %772 = vmatpush1.msra.mxu0 0.0
    %773 = vmatprep.subr.mxu0 0.0
    %774 = vmatpush1.msra.mxu0 0.0
    %775 = vmatprep.subr.mxu0 0.0
    %776 = vmatpush1.msra.mxu0 0.0
    %777 = vmatprep.subr.mxu0 0.0
    %778 = vmatpush1.msra.mxu0 0.0
    %779 = vmatprep.subr.mxu0 0.0
    %780 = vmatpush1.msra.mxu0 0.0
    %781 = vmatprep.subr.mxu0 0.0
    %782 = vmatpush1.msra.mxu0 0.0
    %783 = vmatprep.subr.mxu0 0.0
    %784 = vmatpush1.msra.mxu0 0.0
    %785 = vmatprep.subr.mxu0 0.0
    %786 = vmatpush1.msra.mxu0 0.0
    %787 = vmatprep.subr.mxu0 0.0
    %788 = vmatpush1.msra.mxu0 0.0
    %789 = vmatprep.subr.mxu0 0.0
    %790 = vmatpush1.msra.mxu0 0.0
    %791 = vmatprep.subr.mxu0 0.0
    %792 = vmatpush1.msra.mxu0 0.0
    %793 = vmatprep.subr.mxu0 0.0
    %794 = vmatpush1.msra.mxu0 0.0
    %795 = vmatprep.subr.mxu0 0.0
    %796 = vmatpush1.msra.mxu0 0.0
    %797 = vmatprep.subr.mxu0 0.0
    %798 = vmatpush1.msra.mxu0 0.0
    %799 = vmatprep.subr.mxu0 0.0
    %800 = vmatpush1.msra.mxu0 0.0
    %801 = vmatprep.subr.mxu0 0.0
    %802 = vmatpush1.msra.mxu0 0.0
    %803 = vmatprep.subr.mxu0 0.0
    %804 = vmatpush1.msra.mxu0 0.0
    %805 = vmatprep.subr.mxu0 0.0
    %806 = vmatpush1.msra.mxu0 0.0
    %807 = vmatprep.subr.mxu0 0.0
    %808 = vmatpush1.msra.mxu0 0.0
    %809 = vmatprep.subr.mxu0 0.0
    %810 = vmatpush1.msra.mxu0 0.0
    %811 = vmatprep.subr.mxu0 0.0
    %812 = vmatpush1.msra.mxu0 0.0
    %813 = vmatprep.mubr.f32.mxu0 0.0
    %814 = vmatmul.mubr.f32.gmra.mrb[0].mxu0 %v747
    %v815 = vpop.f32.mrb[0].mxu0
    %v816 = vadd.f32 0.0, %v815
    %v817 = vpop.f32.mrb[0].mxu0
    %v818 = vadd.f32 0.0, %v817
    %819 = vdwg.mxu0
    %v820 = vadd.f32 %v745, %v816
    %v821 = vadd.f32 %v746, %v818
    %v822 = vxor.u32 %v820, 2147483648
    %v823 = vxor.u32 %v821, 2147483648
    %v824 = vmul.f32 %v822, 1.442695
    %v825 = vpow.pop %v824
    %v826 = vmul.f32 %v823, 1.442695
    %v827 = vpow.pop %v826
    %v828 = vadd.f32 %v825, 1.0
    %v829 = vadd.f32 %v827, 1.0
    %v830 = vrcp.pop %v828
    %v831 = vmul.f32 1.0, %v830
    %v832 = vrcp.pop %v829
    %v833 = vmul.f32 1.0, %v832
    %v834 = vtanh.pop %v821
    %v835 = vmul.f32 %v831, %v727
    %837 = vrot.lane.b32.xlu0 %v834, 64
    %v838 = vpop.permute.xlu0 %837
    %v840 = vmul.f32 %v831, %v838
    %842 = vrot.lane.b32.xlu0 %v840, 64
    %v843 = vpop.permute.xlu0 %842
    %v845 = vadd.f32 %v835, %v843
    %v846 = vtanh.pop %v845
    %848 = vrot.lane.b32.xlu0 %v846, 64
    %v849 = vpop.permute.xlu0 %848
    %v851 = vmul.f32 %v833, %v849
    %s852 = scalar_lea.vmem [#allocation3], 32
    %853 = vst.msk [vmem:[%s852] sm:$0xff] %vm380, %v851
    %855 = vrot.lane.b32.xlu0 %v851, 96
    %v856 = vpop.permute.xlu0 %855
    %s858 = scalar_lea.vmem [#allocation4], 24
    %859 = vst.msk [vmem:[%s858] sm:$0xff] %vm380, %v856
    %s860 = smul.u32 5, 2
    %s861 = smul.addr %s860, 8
    %s862 = scalar_lea.vmem [#allocation2], %s861
    %v863 = vld [vmem:[%s862] sm:$0xff]
    %v864 = vld [vmem:[%s862 + $0x8] sm:$0xff]
    %v865 = vsel %vm99, %v851, 0
    %867 = vmatprep.subr.mxu0 %v254
    %868 = vmatpush1.msra.mxu0 %v253
    %869 = vmatprep.subr.mxu0 %v256
    %870 = vmatpush1.msra.mxu0 %v255
    %871 = vmatprep.subr.mxu0 %v258
    %872 = vmatpush1.msra.mxu0 %v257
    %873 = vmatprep.subr.mxu0 %v260
    %874 = vmatpush1.msra.mxu0 %v259
    %875 = vmatprep.subr.mxu0 %v262
    %876 = vmatpush1.msra.mxu0 %v261
    %877 = vmatprep.subr.mxu0 %v264
    %878 = vmatpush1.msra.mxu0 %v263
    %879 = vmatprep.subr.mxu0 %v266
    %880 = vmatpush1.msra.mxu0 %v265
    %881 = vmatprep.subr.mxu0 %v268
    %882 = vmatpush1.msra.mxu0 %v267
    %883 = vmatprep.subr.mxu0 0.0
    %884 = vmatpush1.msra.mxu0 0.0
    %885 = vmatprep.subr.mxu0 0.0
    %886 = vmatpush1.msra.mxu0 0.0
    %887 = vmatprep.subr.mxu0 0.0
    %888 = vmatpush1.msra.mxu0 0.0
    %889 = vmatprep.subr.mxu0 0.0
    %890 = vmatpush1.msra.mxu0 0.0
    %891 = vmatprep.subr.mxu0 0.0
    %892 = vmatpush1.msra.mxu0 0.0
    %893 = vmatprep.subr.mxu0 0.0
    %894 = vmatpush1.msra.mxu0 0.0
    %895 = vmatprep.subr.mxu0 0.0
    %896 = vmatpush1.msra.mxu0 0.0
    %897 = vmatprep.subr.mxu0 0.0
    %898 = vmatpush1.msra.mxu0 0.0
    %899 = vmatprep.subr.mxu0 0.0
    %900 = vmatpush1.msra.mxu0 0.0
    %901 = vmatprep.subr.mxu0 0.0
    %902 = vmatpush1.msra.mxu0 0.0
    %903 = vmatprep.subr.mxu0 0.0
    %904 = vmatpush1.msra.mxu0 0.0
    %905 = vmatprep.subr.mxu0 0.0
    %906 = vmatpush1.msra.mxu0 0.0
    %907 = vmatprep.subr.mxu0 0.0
    %908 = vmatpush1.msra.mxu0 0.0
    %909 = vmatprep.subr.mxu0 0.0
    %910 = vmatpush1.msra.mxu0 0.0
    %911 = vmatprep.subr.mxu0 0.0
    %912 = vmatpush1.msra.mxu0 0.0
    %913 = vmatprep.subr.mxu0 0.0
    %914 = vmatpush1.msra.mxu0 0.0
    %915 = vmatprep.subr.mxu0 0.0
    %916 = vmatpush1.msra.mxu0 0.0
    %917 = vmatprep.subr.mxu0 0.0
    %918 = vmatpush1.msra.mxu0 0.0
    %919 = vmatprep.subr.mxu0 0.0
    %920 = vmatpush1.msra.mxu0 0.0
    %921 = vmatprep.subr.mxu0 0.0
    %922 = vmatpush1.msra.mxu0 0.0
    %923 = vmatprep.subr.mxu0 0.0
    %924 = vmatpush1.msra.mxu0 0.0
    %925 = vmatprep.subr.mxu0 0.0
    %926 = vmatpush1.msra.mxu0 0.0
    %927 = vmatprep.subr.mxu0 0.0
    %928 = vmatpush1.msra.mxu0 0.0
    %929 = vmatprep.subr.mxu0 0.0
    %930 = vmatpush1.msra.mxu0 0.0
    %931 = vmatprep.mubr.f32.mxu0 0.0
    %932 = vmatmul.mubr.f32.gmra.mrb[0].mxu0 %v865
    %v933 = vpop.f32.mrb[0].mxu0
    %v934 = vadd.f32 0.0, %v933
    %v935 = vpop.f32.mrb[0].mxu0
    %v936 = vadd.f32 0.0, %v935
    %937 = vdwg.mxu0
    %v938 = vadd.f32 %v863, %v934
    %v939 = vadd.f32 %v864, %v936
    %v940 = vxor.u32 %v938, 2147483648
    %v941 = vxor.u32 %v939, 2147483648
    %v942 = vmul.f32 %v940, 1.442695
    %v943 = vpow.pop %v942
    %v944 = vmul.f32 %v941, 1.442695
    %v945 = vpow.pop %v944
    %v946 = vadd.f32 %v943, 1.0
    %v947 = vadd.f32 %v945, 1.0
    %v948 = vrcp.pop %v946
    %v949 = vmul.f32 1.0, %v948
    %v950 = vrcp.pop %v947
    %v951 = vmul.f32 1.0, %v950
    %v952 = vtanh.pop %v939
    %v953 = vmul.f32 %v949, %v845
    %955 = vrot.lane.b32.xlu0 %v952, 64
    %v956 = vpop.permute.xlu0 %955
    %v958 = vmul.f32 %v949, %v956
    %960 = vrot.lane.b32.xlu0 %v958, 64
    %v961 = vpop.permute.xlu0 %960
    %v963 = vadd.f32 %v953, %v961
    %v964 = vtanh.pop %v963
    %966 = vrot.lane.b32.xlu0 %v964, 64
    %v967 = vpop.permute.xlu0 %966
    %v969 = vmul.f32 %v951, %v967
    %s970 = scalar_lea.vmem [#allocation3], 40
    %971 = vst.msk [vmem:[%s970] sm:$0xff] %vm380, %v969
    %973 = vrot.lane.b32.xlu0 %v969, 96
    %v974 = vpop.permute.xlu0 %973
    %s976 = scalar_lea.vmem [#allocation4], 16
    %977 = vst.msk [vmem:[%s976] sm:$0xff] %vm380, %v974
    %s978 = smul.u32 6, 2
    %s979 = smul.addr %s978, 8
    %s980 = scalar_lea.vmem [#allocation2], %s979
    %v981 = vld [vmem:[%s980] sm:$0xff]
    %v982 = vld [vmem:[%s980 + $0x8] sm:$0xff]
    %v983 = vsel %vm99, %v969, 0
    %985 = vmatprep.subr.mxu0 %v254
    %986 = vmatpush1.msra.mxu0 %v253
    %987 = vmatprep.subr.mxu0 %v256
    %988 = vmatpush1.msra.mxu0 %v255
    %989 = vmatprep.subr.mxu0 %v258
    %990 = vmatpush1.msra.mxu0 %v257
    %991 = vmatprep.subr.mxu0 %v260
    %992 = vmatpush1.msra.mxu0 %v259
    %993 = vmatprep.subr.mxu0 %v262
    %994 = vmatpush1.msra.mxu0 %v261
    %995 = vmatprep.subr.mxu0 %v264
    %996 = vmatpush1.msra.mxu0 %v263
    %997 = vmatprep.subr.mxu0 %v266
    %998 = vmatpush1.msra.mxu0 %v265
    %999 = vmatprep.subr.mxu0 %v268
    %1000 = vmatpush1.msra.mxu0 %v267
    %1001 = vmatprep.subr.mxu0 0.0
    %1002 = vmatpush1.msra.mxu0 0.0
    %1003 = vmatprep.subr.mxu0 0.0
    %1004 = vmatpush1.msra.mxu0 0.0
    %1005 = vmatprep.subr.mxu0 0.0
    %1006 = vmatpush1.msra.mxu0 0.0
    %1007 = vmatprep.subr.mxu0 0.0
    %1008 = vmatpush1.msra.mxu0 0.0
    %1009 = vmatprep.subr.mxu0 0.0
    %1010 = vmatpush1.msra.mxu0 0.0
    %1011 = vmatprep.subr.mxu0 0.0
    %1012 = vmatpush1.msra.mxu0 0.0
    %1013 = vmatprep.subr.mxu0 0.0
    %1014 = vmatpush1.msra.mxu0 0.0
    %1015 = vmatprep.subr.mxu0 0.0
    %1016 = vmatpush1.msra.mxu0 0.0
    %1017 = vmatprep.subr.mxu0 0.0
    %1018 = vmatpush1.msra.mxu0 0.0
    %1019 = vmatprep.subr.mxu0 0.0
    %1020 = vmatpush1.msra.mxu0 0.0
    %1021 = vmatprep.subr.mxu0 0.0
    %1022 = vmatpush1.msra.mxu0 0.0
    %1023 = vmatprep.subr.mxu0 0.0
    %1024 = vmatpush1.msra.mxu0 0.0
    %1025 = vmatprep.subr.mxu0 0.0
    %1026 = vmatpush1.msra.mxu0 0.0
    %1027 = vmatprep.subr.mxu0 0.0
    %1028 = vmatpush1.msra.mxu0 0.0
    %1029 = vmatprep.subr.mxu0 0.0
    %1030 = vmatpush1.msra.mxu0 0.0
    %1031 = vmatprep.subr.mxu0 0.0
    %1032 = vmatpush1.msra.mxu0 0.0
    %1033 = vmatprep.subr.mxu0 0.0
    %1034 = vmatpush1.msra.mxu0 0.0
    %1035 = vmatprep.subr.mxu0 0.0
    %1036 = vmatpush1.msra.mxu0 0.0
    %1037 = vmatprep.subr.mxu0 0.0
    %1038 = vmatpush1.msra.mxu0 0.0
    %1039 = vmatprep.subr.mxu0 0.0
    %1040 = vmatpush1.msra.mxu0 0.0
    %1041 = vmatprep.subr.mxu0 0.0
    %1042 = vmatpush1.msra.mxu0 0.0
    %1043 = vmatprep.subr.mxu0 0.0
    %1044 = vmatpush1.msra.mxu0 0.0
    %1045 = vmatprep.subr.mxu0 0.0
    %1046 = vmatpush1.msra.mxu0 0.0
    %1047 = vmatprep.subr.mxu0 0.0
    %1048 = vmatpush1.msra.mxu0 0.0
    %1049 = vmatprep.mubr.f32.mxu0 0.0
    %1050 = vmatmul.mubr.f32.gmra.mrb[0].mxu0 %v983
    %v1051 = vpop.f32.mrb[0].mxu0
    %v1052 = vadd.f32 0.0, %v1051
    %v1053 = vpop.f32.mrb[0].mxu0
    %v1054 = vadd.f32 0.0, %v1053
    %1055 = vdwg.mxu0
    %v1056 = vadd.f32 %v981, %v1052
    %v1057 = vadd.f32 %v982, %v1054
    %v1058 = vxor.u32 %v1056, 2147483648
    %v1059 = vxor.u32 %v1057, 2147483648
    %v1060 = vmul.f32 %v1058, 1.442695
    %v1061 = vpow.pop %v1060
    %v1062 = vmul.f32 %v1059, 1.442695
    %v1063 = vpow.pop %v1062
    %v1064 = vadd.f32 %v1061, 1.0
    %v1065 = vadd.f32 %v1063, 1.0
    %v1066 = vrcp.pop %v1064
    %v1067 = vmul.f32 1.0, %v1066
    %v1068 = vrcp.pop %v1065
    %v1069 = vmul.f32 1.0, %v1068
    %v1070 = vtanh.pop %v1057
    %v1071 = vmul.f32 %v1067, %v963
    %1073 = vrot.lane.b32.xlu0 %v1070, 64
    %v1074 = vpop.permute.xlu0 %1073
    %v1076 = vmul.f32 %v1067, %v1074
    %1078 = vrot.lane.b32.xlu0 %v1076, 64
    %v1079 = vpop.permute.xlu0 %1078
    %v1081 = vadd.f32 %v1071, %v1079
    %v1082 = vtanh.pop %v1081
    %1084 = vrot.lane.b32.xlu0 %v1082, 64
    %v1085 = vpop.permute.xlu0 %1084
    %v1087 = vmul.f32 %v1069, %v1085
    %s1088 = scalar_lea.vmem [#allocation3], 48
    %1089 = vst.msk [vmem:[%s1088] sm:$0xff] %vm380, %v1087
    %1091 = vrot.lane.b32.xlu0 %v1087, 96
    %v1092 = vpop.permute.xlu0 %1091
    %s1094 = scalar_lea.vmem [#allocation4], 8
    %1095 = vst.msk [vmem:[%s1094] sm:$0xff] %vm380, %v1092
    %s1096 = smul.u32 7, 2
    %s1097 = smul.addr %s1096, 8
    %s1098 = scalar_lea.vmem [#allocation2], %s1097
    %v1099 = vld [vmem:[%s1098] sm:$0xff]
    %v1100 = vld [vmem:[%s1098 + $0x8] sm:$0xff]
    %v1101 = vsel %vm99, %v1087, 0
    %1103 = vmatprep.subr.mxu0 %v254
    %1104 = vmatpush1.msra.mxu0 %v253
    %1105 = vmatprep.subr.mxu0 %v256
    %1106 = vmatpush1.msra.mxu0 %v255
    %1107 = vmatprep.subr.mxu0 %v258
    %1108 = vmatpush1.msra.mxu0 %v257
    %1109 = vmatprep.subr.mxu0 %v260
    %1110 = vmatpush1.msra.mxu0 %v259
    %1111 = vmatprep.subr.mxu0 %v262
    %1112 = vmatpush1.msra.mxu0 %v261
    %1113 = vmatprep.subr.mxu0 %v264
    %1114 = vmatpush1.msra.mxu0 %v263
    %1115 = vmatprep.subr.mxu0 %v266
    %1116 = vmatpush1.msra.mxu0 %v265
    %1117 = vmatprep.subr.mxu0 %v268
    %1118 = vmatpush1.msra.mxu0 %v267
    %1119 = vmatprep.subr.mxu0 0.0
    %1120 = vmatpush1.msra.mxu0 0.0
    %1121 = vmatprep.subr.mxu0 0.0
    %1122 = vmatpush1.msra.mxu0 0.0
    %1123 = vmatprep.subr.mxu0 0.0
    %1124 = vmatpush1.msra.mxu0 0.0
    %1125 = vmatprep.subr.mxu0 0.0
    %1126 = vmatpush1.msra.mxu0 0.0
    %1127 = vmatprep.subr.mxu0 0.0
    %1128 = vmatpush1.msra.mxu0 0.0
    %1129 = vmatprep.subr.mxu0 0.0
    %1130 = vmatpush1.msra.mxu0 0.0
    %1131 = vmatprep.subr.mxu0 0.0
    %1132 = vmatpush1.msra.mxu0 0.0
    %1133 = vmatprep.subr.mxu0 0.0
    %1134 = vmatpush1.msra.mxu0 0.0
    %1135 = vmatprep.subr.mxu0 0.0
    %1136 = vmatpush1.msra.mxu0 0.0
    %1137 = vmatprep.subr.mxu0 0.0
    %1138 = vmatpush1.msra.mxu0 0.0
    %1139 = vmatprep.subr.mxu0 0.0
    %1140 = vmatpush1.msra.mxu0 0.0
    %1141 = vmatprep.subr.mxu0 0.0
    %1142 = vmatpush1.msra.mxu0 0.0
    %1143 = vmatprep.subr.mxu0 0.0
    %1144 = vmatpush1.msra.mxu0 0.0
    %1145 = vmatprep.subr.mxu0 0.0
    %1146 = vmatpush1.msra.mxu0 0.0
    %1147 = vmatprep.subr.mxu0 0.0
    %1148 = vmatpush1.msra.mxu0 0.0
    %1149 = vmatprep.subr.mxu0 0.0
    %1150 = vmatpush1.msra.mxu0 0.0
    %1151 = vmatprep.subr.mxu0 0.0
    %1152 = vmatpush1.msra.mxu0 0.0
    %1153 = vmatprep.subr.mxu0 0.0
    %1154 = vmatpush1.msra.mxu0 0.0
    %1155 = vmatprep.subr.mxu0 0.0
    %1156 = vmatpush1.msra.mxu0 0.0
    %1157 = vmatprep.subr.mxu0 0.0
    %1158 = vmatpush1.msra.mxu0 0.0
    %1159 = vmatprep.subr.mxu0 0.0
    %1160 = vmatpush1.msra.mxu0 0.0
    %1161 = vmatprep.subr.mxu0 0.0
    %1162 = vmatpush1.msra.mxu0 0.0
    %1163 = vmatprep.subr.mxu0 0.0
    %1164 = vmatpush1.msra.mxu0 0.0
    %1165 = vmatprep.subr.mxu0 0.0
    %1166 = vmatpush1.msra.mxu0 0.0
    %1167 = vmatprep.mubr.f32.mxu0 0.0
    %1168 = vmatmul.mubr.f32.gmra.mrb[0].mxu0 %v1101
    %v1169 = vpop.f32.mrb[0].mxu0
    %v1170 = vadd.f32 0.0, %v1169
    %v1171 = vpop.f32.mrb[0].mxu0
    %v1172 = vadd.f32 0.0, %v1171
    %1173 = vdwg.mxu0
    %v1174 = vadd.f32 %v1099, %v1170
    %v1175 = vadd.f32 %v1100, %v1172
    %v1176 = vxor.u32 %v1174, 2147483648
    %v1177 = vxor.u32 %v1175, 2147483648
    %v1178 = vmul.f32 %v1176, 1.442695
    %v1179 = vpow.pop %v1178
    %v1180 = vmul.f32 %v1177, 1.442695
    %v1181 = vpow.pop %v1180
    %v1182 = vadd.f32 %v1179, 1.0
    %v1183 = vadd.f32 %v1181, 1.0
    %v1184 = vrcp.pop %v1182
    %v1185 = vmul.f32 1.0, %v1184
    %v1186 = vrcp.pop %v1183
    %v1187 = vmul.f32 1.0, %v1186
    %v1188 = vtanh.pop %v1175
    %v1189 = vmul.f32 %v1185, %v1081
    %1191 = vrot.lane.b32.xlu0 %v1188, 64
    %v1192 = vpop.permute.xlu0 %1191
    %v1194 = vmul.f32 %v1185, %v1192
    %1196 = vrot.lane.b32.xlu0 %v1194, 64
    %v1197 = vpop.permute.xlu0 %1196
    %v1199 = vadd.f32 %v1189, %v1197
    %v1200 = vtanh.pop %v1199
    %1202 = vrot.lane.b32.xlu0 %v1200, 64
    %v1203 = vpop.permute.xlu0 %1202
    %v1205 = vmul.f32 %v1187, %v1203
    %s1206 = scalar_lea.vmem [#allocation3], 56
    %1207 = vst.msk [vmem:[%s1206] sm:$0xff] %vm380, %v1205
    %1209 = vrot.lane.b32.xlu0 %v1205, 96
    %v1210 = vpop.permute.xlu0 %1209
    %1212 = vst.msk [vmem:[#allocation4] sm:$0xff] %vm380, %v1210
    %v1213 = vld [vmem:[%s4] sm:$0xff]
    %v1214 = vld [vmem:[%s4 + $0x8] sm:$0xff]
    %v1215 = vld [vmem:[%s4 + $0x10] sm:$0xff]
    %v1216 = vld [vmem:[%s4 + $0x18] sm:$0xff]
    %v1217 = vld [vmem:[%s4 + $0x20] sm:$0xff]
    %v1218 = vld [vmem:[%s4 + $0x28] sm:$0xff]
    %v1219 = vld [vmem:[%s4 + $0x30] sm:$0xff]
    %v1220 = vld [vmem:[%s4 + $0x38] sm:$0xff]
    %v1221 = vld [vmem:[%s5] sm:$0x1]
    %v1223 = vlaneseq
    %v1224 = vshrl.u32 %v1223, 7
    %v1225 = vsub.s32 0, %v1224
    %v1226 = vrot.slane %v1221, %v1225
    %v1228 = vsel %vm99, %v1205, 0
    %1230 = vmatprep.subr.mxu0 0.0
    %1231 = vmatpush1.msra.mxu0 %v1213
    %1232 = vmatprep.subr.mxu0 0.0
    %1233 = vmatpush1.msra.mxu0 %v1214
    %1234 = vmatprep.subr.mxu0 0.0
    %1235 = vmatpush1.msra.mxu0 %v1215
    %1236 = vmatprep.subr.mxu0 0.0
    %1237 = vmatpush1.msra.mxu0 %v1216
    %1238 = vmatprep.subr.mxu0 0.0
    %1239 = vmatpush1.msra.mxu0 %v1217
    %1240 = vmatprep.subr.mxu0 0.0
    %1241 = vmatpush1.msra.mxu0 %v1218
    %1242 = vmatprep.subr.mxu0 0.0
    %1243 = vmatpush1.msra.mxu0 %v1219
    %1244 = vmatprep.subr.mxu0 0.0
    %1245 = vmatpush1.msra.mxu0 %v1220
    %1246 = vmatprep.subr.mxu0 0.0
    %1247 = vmatpush1.msra.mxu0 0.0
    %1248 = vmatprep.subr.mxu0 0.0
    %1249 = vmatpush1.msra.mxu0 0.0
    %1250 = vmatprep.subr.mxu0 0.0
    %1251 = vmatpush1.msra.mxu0 0.0
    %1252 = vmatprep.subr.mxu0 0.0
    %1253 = vmatpush1.msra.mxu0 0.0
    %1254 = vmatprep.subr.mxu0 0.0
    %1255 = vmatpush1.msra.mxu0 0.0
    %1256 = vmatprep.subr.mxu0 0.0
    %1257 = vmatpush1.msra.mxu0 0.0
    %1258 = vmatprep.subr.mxu0 0.0
    %1259 = vmatpush1.msra.mxu0 0.0
    %1260 = vmatprep.subr.mxu0 0.0
    %1261 = vmatpush1.msra.mxu0 0.0
    %1262 = vmatprep.subr.mxu0 0.0
    %1263 = vmatpush1.msra.mxu0 0.0
    %1264 = vmatprep.subr.mxu0 0.0
    %1265 = vmatpush1.msra.mxu0 0.0
    %1266 = vmatprep.subr.mxu0 0.0
    %1267 = vmatpush1.msra.mxu0 0.0
    %1268 = vmatprep.subr.mxu0 0.0
    %1269 = vmatpush1.msra.mxu0 0.0
    %1270 = vmatprep.subr.mxu0 0.0
    %1271 = vmatpush1.msra.mxu0 0.0
    %1272 = vmatprep.subr.mxu0 0.0
    %1273 = vmatpush1.msra.mxu0 0.0
    %1274 = vmatprep.subr.mxu0 0.0
    %1275 = vmatpush1.msra.mxu0 0.0
    %1276 = vmatprep.subr.mxu0 0.0
    %1277 = vmatpush1.msra.mxu0 0.0
    %1278 = vmatprep.subr.mxu0 0.0
    %1279 = vmatpush1.msra.mxu0 0.0
    %1280 = vmatprep.subr.mxu0 0.0
    %1281 = vmatpush1.msra.mxu0 0.0
    %1282 = vmatprep.subr.mxu0 0.0
    %1283 = vmatpush1.msra.mxu0 0.0
    %1284 = vmatprep.subr.mxu0 0.0
    %1285 = vmatpush1.msra.mxu0 0.0
    %1286 = vmatprep.subr.mxu0 0.0
    %1287 = vmatpush1.msra.mxu0 0.0
    %1288 = vmatprep.subr.mxu0 0.0
    %1289 = vmatpush1.msra.mxu0 0.0
    %1290 = vmatprep.subr.mxu0 0.0
    %1291 = vmatpush1.msra.mxu0 0.0
    %1292 = vmatprep.subr.mxu0 0.0
    %1293 = vmatpush1.msra.mxu0 0.0
    %1294 = vmatprep.mubr.f32.mxu0 0.0
    %1295 = vmatmul.mubr.f32.gmra.mrb[0].mxu0 %v1228
    %v1296 = vpop.f32.mrb[0].mxu0
    %v1297 = vadd.f32 %v1226, %v1296
    %v1298 = vpop.f32.mrb[0].mxu0
    %1299 = vdwg.mxu0
    %vm1300 = vcmask 97280
    %1301 = vst.msk [vmem:[#allocation10] sm:$0xff] %vm1300, %v1297
    %v1302 = vld [vmem:[#allocation3] sm:$0xff]
    %v1303 = vld [vmem:[#allocation3 + $0x8] sm:$0xff]
    %v1304 = vld [vmem:[#allocation3 + $0x10] sm:$0xff]
    %v1305 = vld [vmem:[#allocation3 + $0x18] sm:$0xff]
    %v1306 = vld [vmem:[#allocation3 + $0x20] sm:$0xff]
    %v1307 = vld [vmem:[#allocation3 + $0x28] sm:$0xff]
    %v1308 = vld [vmem:[#allocation3 + $0x30] sm:$0xff]
    %v1309 = vld [vmem:[#allocation3 + $0x38] sm:$0xff]
    %v1310 = vld [vmem:[%s6] sm:$0xff]
    %v1311 = vld [vmem:[%s6 + $0x8] sm:$0xff]
    %v1312 = vld [vmem:[%s6 + $0x10] sm:$0xff]
    %v1313 = vld [vmem:[%s6 + $0x18] sm:$0xff]
    %v1314 = vld [vmem:[#allocation4] sm:$0xff]
    %v1315 = vld [vmem:[#allocation4 + $0x8] sm:$0xff]
    %v1316 = vld [vmem:[#allocation4 + $0x10] sm:$0xff]
    %v1317 = vld [vmem:[#allocation4 + $0x18] sm:$0xff]
    %v1318 = vld [vmem:[#allocation4 + $0x20] sm:$0xff]
    %v1319 = vld [vmem:[#allocation4 + $0x28] sm:$0xff]
    %v1320 = vld [vmem:[#allocation4 + $0x30] sm:$0xff]
    %v1321 = vld [vmem:[#allocation4 + $0x38] sm:$0xff]
    %v1322 = vld [vmem:[%s7] sm:$0xff]
    %v1323 = vld [vmem:[%s7 + $0x8] sm:$0xff]
    %v1324 = vld [vmem:[%s7 + $0x10] sm:$0xff]
    %v1325 = vld [vmem:[%s7 + $0x18] sm:$0xff]
    %v1327 = vsel %vm380, %v1314, 0
    %v1330 = vsel %vm380, %v1315, 0
    %v1333 = vsel %vm380, %v1316, 0
    %v1336 = vsel %vm380, %v1317, 0
    %v1339 = vsel %vm380, %v1318, 0
    %v1342 = vsel %vm380, %v1319, 0
    %v1345 = vsel %vm380, %v1320, 0
    %v1348 = vsel %vm380, %v1321, 0
    %1350 = vmatprep.subr.mxu0 0.0
    %1351 = vmatpush1.msra.mxu0 %v1322
    %1352 = vmatprep.subr.mxu0 0.0
    %1353 = vmatpush1.msra.mxu0 %v1323
    %1354 = vmatprep.subr.mxu0 0.0
    %1355 = vmatpush1.msra.mxu0 %v1324
    %1356 = vmatprep.subr.mxu0 0.0
    %1357 = vmatpush1.msra.mxu0 %v1325
    %1358 = vmatprep.subr.mxu0 0.0
    %1359 = vmatpush1.msra.mxu0 0.0
    %1360 = vmatprep.subr.mxu0 0.0
    %1361 = vmatpush1.msra.mxu0 0.0
    %1362 = vmatprep.subr.mxu0 0.0
    %1363 = vmatpush1.msra.mxu0 0.0
    %1364 = vmatprep.subr.mxu0 0.0
    %1365 = vmatpush1.msra.mxu0 0.0
    %1366 = vmatprep.subr.mxu0 0.0
    %1367 = vmatpush1.msra.mxu0 0.0
    %1368 = vmatprep.subr.mxu0 0.0
    %1369 = vmatpush1.msra.mxu0 0.0
    %1370 = vmatprep.subr.mxu0 0.0
    %1371 = vmatpush1.msra.mxu0 0.0
    %1372 = vmatprep.subr.mxu0 0.0
    %1373 = vmatpush1.msra.mxu0 0.0
    %1374 = vmatprep.subr.mxu0 0.0
    %1375 = vmatpush1.msra.mxu0 0.0
    %1376 = vmatprep.subr.mxu0 0.0
    %1377 = vmatpush1.msra.mxu0 0.0
    %1378 = vmatprep.subr.mxu0 0.0
    %1379 = vmatpush1.msra.mxu0 0.0
    %1380 = vmatprep.subr.mxu0 0.0
    %1381 = vmatpush1.msra.mxu0 0.0
    %1382 = vmatprep.subr.mxu0 0.0
    %1383 = vmatpush1.msra.mxu0 0.0
    %1384 = vmatprep.subr.mxu0 0.0
    %1385 = vmatpush1.msra.mxu0 0.0
    %1386 = vmatprep.subr.mxu0 0.0
    %1387 = vmatpush1.msra.mxu0 0.0
    %1388 = vmatprep.subr.mxu0 0.0
    %1389 = vmatpush1.msra.mxu0 0.0
    %1390 = vmatprep.subr.mxu0 0.0
    %1391 = vmatpush1.msra.mxu0 0.0
    %1392 = vmatprep.subr.mxu0 0.0
    %1393 = vmatpush1.msra.mxu0 0.0
    %1394 = vmatprep.subr.mxu0 0.0
    %1395 = vmatpush1.msra.mxu0 0.0
    %1396 = vmatprep.subr.mxu0 0.0
    %1397 = vmatpush1.msra.mxu0 0.0
    %1398 = vmatprep.subr.mxu0 0.0
    %1399 = vmatpush1.msra.mxu0 0.0
    %1400 = vmatprep.subr.mxu0 0.0
    %1401 = vmatpush1.msra.mxu0 0.0
    %1402 = vmatprep.subr.mxu0 0.0
    %1403 = vmatpush1.msra.mxu0 0.0
    %1404 = vmatprep.subr.mxu0 0.0
    %1405 = vmatpush1.msra.mxu0 0.0
    %1406 = vmatprep.subr.mxu0 0.0
    %1407 = vmatpush1.msra.mxu0 0.0
    %1408 = vmatprep.subr.mxu0 0.0
    %1409 = vmatpush1.msra.mxu0 0.0
    %1410 = vmatprep.subr.mxu0 0.0
    %1411 = vmatpush1.msra.mxu0 0.0
    %1412 = vmatprep.subr.mxu0 0.0
    %1413 = vmatpush1.msra.mxu0 0.0
    %1414 = vmatprep.mubr.f32.mxu0 0.0
    %1415 = vmatmul.mubr.f32.gmra.mrb[0].mxu0 %v1327
    %v1416 = vpop.f32.mrb[0].mxu0
    %v1417 = vadd.f32 0.0, %v1416
    %v1418 = vpop.f32.mrb[0].mxu0
    %1419 = vmatprep.mubr.f32.mxu0 0.0
    %1420 = vmatmul.mubr.f32.gmra.mrb[0].mxu0 %v1330
    %v1421 = vpop.f32.mrb[0].mxu0
    %v1422 = vadd.f32 0.0, %v1421
    %v1423 = vpop.f32.mrb[0].mxu0
    %1424 = vmatprep.mubr.f32.mxu0 0.0
    %1425 = vmatmul.mubr.f32.gmra.mrb[0].mxu0 %v1333
    %v1426 = vpop.f32.mrb[0].mxu0
    %v1427 = vadd.f32 0.0, %v1426
    %v1428 = vpop.f32.mrb[0].mxu0
    %1429 = vmatprep.mubr.f32.mxu0 0.0
    %1430 = vmatmul.mubr.f32.gmra.mrb[0].mxu0 %v1336
    %v1431 = vpop.f32.mrb[0].mxu0
    %v1432 = vadd.f32 0.0, %v1431
    %v1433 = vpop.f32.mrb[0].mxu0
    %1434 = vmatprep.mubr.f32.mxu0 0.0
    %1435 = vmatmul.mubr.f32.gmra.mrb[0].mxu0 %v1339
    %v1436 = vpop.f32.mrb[0].mxu0
    %v1437 = vadd.f32 0.0, %v1436
    %v1438 = vpop.f32.mrb[0].mxu0
    %1439 = vmatprep.mubr.f32.mxu0 0.0
    %1440 = vmatmul.mubr.f32.gmra.mrb[0].mxu0 %v1342
    %v1441 = vpop.f32.mrb[0].mxu0
    %v1442 = vadd.f32 0.0, %v1441
    %v1443 = vpop.f32.mrb[0].mxu0
    %1444 = vmatprep.mubr.f32.mxu0 0.0
    %1445 = vmatmul.mubr.f32.gmra.mrb[0].mxu0 %v1345
    %v1446 = vpop.f32.mrb[0].mxu0
    %v1447 = vadd.f32 0.0, %v1446
    %v1448 = vpop.f32.mrb[0].mxu0
    %1449 = vmatprep.mubr.f32.mxu0 0.0
    %1450 = vmatmul.mubr.f32.gmra.mrb[0].mxu0 %v1348
    %v1451 = vpop.f32.mrb[0].mxu0
    %v1452 = vadd.f32 0.0, %v1451
    %v1453 = vpop.f32.mrb[0].mxu0
    %1454 = vdwg.mxu0
    %v1456 = vsel %vm380, %v1302, 0
    %v1459 = vsel %vm380, %v1303, 0
    %v1462 = vsel %vm380, %v1304, 0
    %v1465 = vsel %vm380, %v1305, 0
    %v1468 = vsel %vm380, %v1306, 0
    %v1471 = vsel %vm380, %v1307, 0
    %v1474 = vsel %vm380, %v1308, 0
    %v1477 = vsel %vm380, %v1309, 0
    %1479 = vmatprep.subr.mxu0 0.0
    %1480 = vmatpush1.msra.mxu0 %v1310
    %1481 = vmatprep.subr.mxu0 0.0
    %1482 = vmatpush1.msra.mxu0 %v1311
    %1483 = vmatprep.subr.mxu0 0.0
    %1484 = vmatpush1.msra.mxu0 %v1312
    %1485 = vmatprep.subr.mxu0 0.0
    %1486 = vmatpush1.msra.mxu0 %v1313
    %1487 = vmatprep.subr.mxu0 0.0
    %1488 = vmatpush1.msra.mxu0 0.0
    %1489 = vmatprep.subr.mxu0 0.0
    %1490 = vmatpush1.msra.mxu0 0.0
    %1491 = vmatprep.subr.mxu0 0.0
    %1492 = vmatpush1.msra.mxu0 0.0
    %1493 = vmatprep.subr.mxu0 0.0
    %1494 = vmatpush1.msra.mxu0 0.0
    %1495 = vmatprep.subr.mxu0 0.0
    %1496 = vmatpush1.msra.mxu0 0.0
    %1497 = vmatprep.subr.mxu0 0.0
    %1498 = vmatpush1.msra.mxu0 0.0
    %1499 = vmatprep.subr.mxu0 0.0
    %1500 = vmatpush1.msra.mxu0 0.0
    %1501 = vmatprep.subr.mxu0 0.0
    %1502 = vmatpush1.msra.mxu0 0.0
    %1503 = vmatprep.subr.mxu0 0.0
    %1504 = vmatpush1.msra.mxu0 0.0
    %1505 = vmatprep.subr.mxu0 0.0
    %1506 = vmatpush1.msra.mxu0 0.0
    %1507 = vmatprep.subr.mxu0 0.0
    %1508 = vmatpush1.msra.mxu0 0.0
    %1509 = vmatprep.subr.mxu0 0.0
    %1510 = vmatpush1.msra.mxu0 0.0
    %1511 = vmatprep.subr.mxu0 0.0
    %1512 = vmatpush1.msra.mxu0 0.0
    %1513 = vmatprep.subr.mxu0 0.0
    %1514 = vmatpush1.msra.mxu0 0.0
    %1515 = vmatprep.subr.mxu0 0.0
    %1516 = vmatpush1.msra.mxu0 0.0
    %1517 = vmatprep.subr.mxu0 0.0
    %1518 = vmatpush1.msra.mxu0 0.0
    %1519 = vmatprep.subr.mxu0 0.0
    %1520 = vmatpush1.msra.mxu0 0.0
    %1521 = vmatprep.subr.mxu0 0.0
    %1522 = vmatpush1.msra.mxu0 0.0
    %1523 = vmatprep.subr.mxu0 0.0
    %1524 = vmatpush1.msra.mxu0 0.0
    %1525 = vmatprep.subr.mxu0 0.0
    %1526 = vmatpush1.msra.mxu0 0.0
    %1527 = vmatprep.subr.mxu0 0.0
    %1528 = vmatpush1.msra.mxu0 0.0
    %1529 = vmatprep.subr.mxu0 0.0
    %1530 = vmatpush1.msra.mxu0 0.0
    %1531 = vmatprep.subr.mxu0 0.0
    %1532 = vmatpush1.msra.mxu0 0.0
    %1533 = vmatprep.subr.mxu0 0.0
    %1534 = vmatpush1.msra.mxu0 0.0
    %1535 = vmatprep.subr.mxu0 0.0
    %1536 = vmatpush1.msra.mxu0 0.0
    %1537 = vmatprep.subr.mxu0 0.0
    %1538 = vmatpush1.msra.mxu0 0.0
    %1539 = vmatprep.subr.mxu0 0.0
    %1540 = vmatpush1.msra.mxu0 0.0
    %1541 = vmatprep.subr.mxu0 0.0
    %1542 = vmatpush1.msra.mxu0 0.0
    %1543 = vmatprep.mubr.f32.mxu0 0.0
    %1544 = vmatmul.mubr.f32.gmra.mrb[0].mxu0 %v1456
    %v1545 = vpop.f32.mrb[0].mxu0
    %v1546 = vadd.f32 %v1417, %v1545
    %v1547 = vpop.f32.mrb[0].mxu0
    %1548 = vmatprep.mubr.f32.mxu0 0.0
    %1549 = vmatmul.mubr.f32.gmra.mrb[0].mxu0 %v1459
    %v1550 = vpop.f32.mrb[0].mxu0
    %v1551 = vadd.f32 %v1422, %v1550
    %v1552 = vpop.f32.mrb[0].mxu0
    %1553 = vmatprep.mubr.f32.mxu0 0.0
    %1554 = vmatmul.mubr.f32.gmra.mrb[0].mxu0 %v1462
    %v1555 = vpop.f32.mrb[0].mxu0
    %v1556 = vadd.f32 %v1427, %v1555
    %v1557 = vpop.f32.mrb[0].mxu0
    %1558 = vmatprep.mubr.f32.mxu0 0.0
    %1559 = vmatmul.mubr.f32.gmra.mrb[0].mxu0 %v1465
    %v1560 = vpop.f32.mrb[0].mxu0
    %v1561 = vadd.f32 %v1432, %v1560
    %v1562 = vpop.f32.mrb[0].mxu0
    %1563 = vmatprep.mubr.f32.mxu0 0.0
    %1564 = vmatmul.mubr.f32.gmra.mrb[0].mxu0 %v1468
    %v1565 = vpop.f32.mrb[0].mxu0
    %v1566 = vadd.f32 %v1437, %v1565
    %v1567 = vpop.f32.mrb[0].mxu0
    %1568 = vmatprep.mubr.f32.mxu0 0.0
    %1569 = vmatmul.mubr.f32.gmra.mrb[0].mxu0 %v1471
    %v1570 = vpop.f32.mrb[0].mxu0
    %v1571 = vadd.f32 %v1442, %v1570
    %v1572 = vpop.f32.mrb[0].mxu0
    %1573 = vmatprep.mubr.f32.mxu0 0.0
    %1574 = vmatmul.mubr.f32.gmra.mrb[0].mxu0 %v1474
    %v1575 = vpop.f32.mrb[0].mxu0
    %v1576 = vadd.f32 %v1447, %v1575
    %v1577 = vpop.f32.mrb[0].mxu0
    %1578 = vmatprep.mubr.f32.mxu0 0.0
    %1579 = vmatmul.mubr.f32.gmra.mrb[0].mxu0 %v1477
    %v1580 = vpop.f32.mrb[0].mxu0
    %v1581 = vadd.f32 %v1452, %v1580
    %v1582 = vpop.f32.mrb[0].mxu0
    %1583 = vdwg.mxu0
    %v1584 = vld [vmem:[%s8] sm:$0x1]
    %v1586 = vlaneseq
    %v1587 = vshrl.u32 %v1586, 7
    %v1588 = vsub.s32 0, %v1587
    %v1589 = vrot.slane %v1584, %v1588
    %v1591 = vadd.f32 %v1546, %v1589
    %v1592 = vadd.f32 %v1551, %v1589
    %v1593 = vadd.f32 %v1556, %v1589
    %v1594 = vadd.f32 %v1561, %v1589
    %v1595 = vadd.f32 %v1566, %v1589
    %v1596 = vadd.f32 %v1571, %v1589
    %v1597 = vadd.f32 %v1576, %v1589
    %v1598 = vadd.f32 %v1581, %v1589
    %vm1599 = vcmask 130048
    %1600 = vst.msk [vmem:[%s10] sm:$0xff] %vm1599, %v1591
    %1601 = vst.msk [vmem:[%s10 + $0x8] sm:$0xff] %vm1599, %v1592
    %1602 = vst.msk [vmem:[%s10 + $0x10] sm:$0xff] %vm1599, %v1593
    %1603 = vst.msk [vmem:[%s10 + $0x18] sm:$0xff] %vm1599, %v1594
    %1604 = vst.msk [vmem:[%s10 + $0x20] sm:$0xff] %vm1599, %v1595
    %1605 = vst.msk [vmem:[%s10 + $0x28] sm:$0xff] %vm1599, %v1596
    %1606 = vst.msk [vmem:[%s10 + $0x30] sm:$0xff] %vm1599, %v1597
    %1607 = vst.msk [vmem:[%s10 + $0x38] sm:$0xff] %vm1599, %v1598
    // Predicated region
    $region46: #{tpu_custom_call.1} parent=1 // pred_check
      _
    $region47: #{tpu_custom_call.1} parent=1 // pred_check_branch
      %1609 = sbr.rel (0) target = $region49
    $region48: #{tpu_custom_call.1} parent=1 // pred_region
      %s1611 = ssub.s32 128, 128
      %1612 = vsyncadd [#allocation7], %s1611
      %s1614 = sshll.u32 [#allocation10], 4
      %s1615 = int_to_ptr.vmem [resolvable:$true] %s1614
      %1617 = dma.vmem_to_hbm [thread:$0]  %s1615, 128, %s9, [#allocation7]
    $region49: #{tpu_custom_call.1} parent=1 // pred_fallthru
      _
    // Predicated region
    $region50: #{tpu_custom_call.1} parent=1 // pred_check
      _
    $region51: #{tpu_custom_call.1} parent=1 // pred_check_branch
      %1619 = sbr.rel (0) target = $region53
    $region52: #{tpu_custom_call.1} parent=1 // pred_region
      _
    $region53: #{tpu_custom_call.1} parent=1 // pred_fallthru
      _
    // Predicated region
    $region54: #{tpu_custom_call.1} parent=1 // pred_check
      _
    $region55: #{tpu_custom_call.1} parent=1 // pred_check_branch
      %1621 = sbr.rel (0) target = $region57
    $region56: #{tpu_custom_call.1} parent=1 // pred_region
      %1622 = dma.done [#allocation7], 128
    $region57: #{tpu_custom_call.1} parent=1 // pred_fallthru
      _
    // Predicated region
    $region58: #{tpu_custom_call.1} parent=1 // pred_check
      _
    $region59: #{tpu_custom_call.1} parent=1 // pred_check_branch
      %1624 = sbr.rel (0) target = $region61
    $region60: #{tpu_custom_call.1} parent=1 // pred_region
      _
    $region61: #{tpu_custom_call.1} parent=1 // pred_fallthru
      _
    %1625 = vsyncpa [#allocation6], 1
    %1626 = vsyncpa [#allocation9], 1
    %1627 = vsyncpa [#allocation7], 1

</llo_original>
